<compile_context>
chip_gen: v7x
topology: tpu7x:2x2x1
jax: 0.10.0
libtpu: 0.0.40
codegen_flags: <defaults>
</compile_context>

<pallas_src>
import jax
import jax.numpy as jnp
from jax import lax
from jax.experimental import pallas as pl
from jax.experimental.pallas import tpu as pltpu


# ----------------------------- kernel ------------------------------------- #

def _fused_embed_kernel(xs_ref, xe_ref, xt_ref, w1_ref, b1_ref, w2_ref, b2_ref,
                        o_ref, h_acc):
    """One (branch, b_tile, k) grid step.

    xs/xe/xt: [tb, tk] f32 (only the current branch's tile is "fresh"; the other
              two are pinned to block (0,0) by their index_maps — VMEM-only cost)
    w1: [tk, Dp] bf16   b1: [1, Dp] f32
    w2: [Dp, Fp] bf16   b2: [1, Fp] f32
    o:  [tb, Fp] f32    h_acc: [tb, Dp] f32 VMEM scratch (first-linear accumulator)
    """
    br = pl.program_id(0)
    k = pl.program_id(2)

    @pl.when(k == 0)
    def _():
        # Hoist the first-linear bias into the accumulator init.
        h_acc[...] = jnp.broadcast_to(b1_ref[...], h_acc.shape)

    # Select this branch's activation tile (cheap VMEM loads + VPU selects) and
    # cast to bf16 in-register — the HBM side stays f32, no wrapper cast pass.
    x = jnp.where(br == 0, xs_ref[...],
                  jnp.where(br == 1, xe_ref[...], xt_ref[...]))
    # First linear, K-tiled: bf16 x bf16 -> f32 accumulate on the MXU.
    h_acc[...] += jnp.dot(x.astype(w1_ref.dtype), w1_ref[...],
                          preferred_element_type=jnp.float32)

    @pl.when(k == pl.num_programs(2) - 1)
    def _():
        h = jnp.maximum(h_acc[...], 0.0).astype(w2_ref.dtype)   # ReLU -> bf16
        z = jnp.dot(h, w2_ref[...], preferred_element_type=jnp.float32) + b2_ref[...]
        # F.normalize(p=2, dim=1): z / clamp_min(||z||, 1e-12)
        #                        == z * rsqrt(clamp(||z||^2, 1e-24))
        ssq = jnp.sum(z * z, axis=1, keepdims=True)
        inv = lax.rsqrt(jnp.maximum(ssq, 1e-24))                 # EUP
        o_ref[...] = (z * inv).astype(o_ref.dtype)


# --------------------------- sizing helpers -------------------------------- #

def _round_up(n, m):
    return ((n + m - 1) // m) * m


def _vmem_capacity_bytes():
    try:
        return int(pltpu.get_tpu_info().vmem_capacity_bytes)
    except Exception:
        return 64 * 1024 * 1024          # conservative (v7x per-core VMEM)


def _mxu_lane_align():
    """MXU N-dim alignment: 256 on v6e/v7x, 128 on v5e (128-wide MXU)."""
    try:
        info = pltpu.get_tpu_info()
        desc = " ".join(str(getattr(info, a, "")) for a in
                        ("chip_version", "version", "device_kind", "name")).lower()
        if "v5" in desc:
            return 128
    except Exception:
        pass
    return 256


def _pick_tb(bp):
    for cand in (256, 128, 64, 32, 16):
        if bp % cand == 0:
            return min(cand, bp)
    return bp


def _vmem_bytes(tb, tk, dp, fp):
    """Rough per-kernel VMEM footprint for the chosen tiling."""
    return (3 * 2 * tb * tk * 4          # x_s / x_ema / x_t blocks, double-buffered, f32
            + 2 * tk * dp * 2            # w1 (bf16), double-buffered
            + 2 * dp * 4                 # b1
            + 1 * dp * fp * 2            # w2 (bf16), single-buffered (pl.Buffered(1))
            + 2 * fp * 4                 # b2
            + 2 * tb * fp * 4            # output block, double-buffered
            + tb * dp * 4)               # h_acc scratch


def _pick_tk(dp, tb, fp, budget):
    """Largest lane-aligned K tile of w1 that divides Dp and fits the VMEM budget."""
    for cand in (512, 256, 128):
        if dp % cand == 0 and _vmem_bytes(tb, cand, dp, fp) <= budget:
            return cand
    return 128 if dp % 128 == 0 else dp


# ------------------------- one-time weight prep ---------------------------- #

def prepare_params(params, mxu_n_align=None):
    """Pad / stack / bf16-cast the per-branch weights ONCE (cache the result).

    Keeping this out of the per-call path removes 3*(D*D + D*F) bytes of XLA
    pad/stack/cast traffic from every forward — the single largest wall-clock
    win at realistic D.
    """
    names = ("s", "ema", "t")
    D = params["s"][0].shape[0]
    F = params["s"][3].shape[0]
    Dp = _round_up(D, 128)
    if mxu_n_align is None:
        mxu_n_align = _mxu_lane_align()
    Fp = _round_up(F, mxu_n_align)

    def pad2(a, r, c):
        return jnp.pad(a, ((0, r - a.shape[0]), (0, c - a.shape[1])))

    w1 = jnp.stack([pad2(params[n][0], Dp, Dp) for n in names]).astype(jnp.bfloat16)
    b1 = jnp.stack([jnp.pad(params[n][1], (0, Dp - D)).reshape(1, Dp)
                    for n in names]).astype(jnp.float32)
    w2 = jnp.stack([pad2(params[n][2], Dp, Fp) for n in names]).astype(jnp.bfloat16)
    b2 = jnp.stack([jnp.pad(params[n][3], (0, Fp - F)).reshape(1, Fp)
                    for n in names]).astype(jnp.float32)
    return {"w1": w1, "b1": b1, "w2": w2, "b2": b2, "dims": (D, F, Dp, Fp)}


# ------------------------------ forward ------------------------------------ #

def cmo_ematec_forward(f_s, f_ema, f_t, prepared):
    """Forward pass of CMO_EmaTec (head='mlp') for the three branches.

    f_s, f_ema, f_t: NCHW feature maps [B, C, H, W] (or already-flat [B, D]).
    prepared: output of prepare_params (cached padded/stacked bf16 weights).
    Returns (f_s_emb, f_ema_emb, f_t_emb), each [B, F] f32, L2-normalized (dim=1).
    """
    D, F, Dp, Fp = prepared["dims"]
    xs = [x.reshape(x.shape[0], -1) for x in (f_s, f_ema, f_t)]   # torch.flatten(x, 1)
    B = xs[0].shape[0]
    assert xs[0].shape[1] == D, "feature dim does not match prepared params"

    Bp = _round_up(B, 16)              # bf16 sublane packing for MXU operands
    tb = _pick_tb(Bp)
    n_b = Bp // tb

    capacity = _vmem_capacity_bytes()
    budget = int(0.6 * capacity)
    tk = _pick_tk(Dp, tb, Fp, budget)
    n_k = Dp // tk

    need = _vmem_bytes(tb, tk, Dp, Fp)
    vmem_limit = int(min(0.85 * capacity, max(2 * need, 32 * 1024 * 1024)))

    # Pad activations only when misaligned (zero extra HBM traffic otherwise);
    # they stay f32 in HBM and are cast to bf16 inside the kernel.
    def maybe_pad(a):
        if a.shape == (Bp, Dp):
            return a
        return jnp.pad(a, ((0, Bp - a.shape[0]), (0, Dp - a.shape[1])))

    xs = [maybe_pad(x) for x in xs]

    ce = pl.CostEstimate(
        flops=2 * 3 * B * D * (D + F),
        transcendentals=3 * B,
        bytes_accessed=3 * (B * D * 4 + (D * D + D * F) * 2 + (D + F) * 4 + B * F * 4),
    )

    def build_in_specs(use_buffered):
        # Unused branches keep block (0, 0) so the pipeline's revisit-skip avoids
        # re-fetching them from HBM on every step.
        x_specs = [
            pl.BlockSpec((tb, tk),
                         lambda br, bt, k, j=j: (jnp.where(br == j, bt, 0),
                                                 jnp.where(br == j, k, 0)))
            for j in range(3)
        ]
        w2_kwargs = {"pipeline_mode": pl.Buffered(1)} if use_buffered else {}
        try:
            w2_spec = pl.BlockSpec((None, Dp, Fp), lambda br, bt, k: (br, 0, 0),
                                   **w2_kwargs)
        except Exception:
            w2_spec = pl.BlockSpec((None, Dp, Fp), lambda br, bt, k: (br, 0, 0))
        return x_specs + [
            pl.BlockSpec((None, tk, Dp), lambda br, bt, k: (br, k, 0)),   # w1 streams over k
            pl.BlockSpec((None, 1, Dp), lambda br, bt, k: (br, 0, 0)),    # b1
            w2_spec,                                                      # w2 (resident)
            pl.BlockSpec((None, 1, Fp), lambda br, bt, k: (br, 0, 0)),    # b2
        ]

    def run(use_buffered):
        return pl.pallas_call(
            _fused_embed_kernel,
            out_shape=jax.ShapeDtypeStruct((3, Bp, Fp), jnp.float32),
            grid_spec=pltpu.PrefetchScalarGridSpec(
                num_scalar_prefetch=0,
                grid=(3, n_b, n_k),                      # (branch, batch tile, K tile)
                in_specs=build_in_specs(use_buffered),
                out_specs=pl.BlockSpec((None, tb, Fp), lambda br, bt, k: (br, bt, 0)),
                scratch_shapes=[pltpu.VMEM((tb, Dp), jnp.float32)],
            ),
            compiler_params=pltpu.CompilerParams(
                dimension_semantics=("parallel", "parallel", "arbitrary"),
                vmem_limit_bytes=vmem_limit),
            cost_estimate=ce,
        )(xs[0], xs[1], xs[2],
          prepared["w1"], prepared["b1"], prepared["w2"], prepared["b2"])

    try:
        out = run(True)                  # w2 single-buffered (VMEM win on v7x)
    except Exception:
        out = run(False)                 # fallback if pipeline_mode unsupported

    # Note: for very large Dp*Fp even a single-buffered w2 may not fit VMEM; the
    # next step would be streaming w2 with pltpu.emit_pipeline in the epilogue.
    out = out[:, :B, :F]
    return out[0], out[1], out[2]


# ------------------------------- init -------------------------------------- #

def init_params(key, d, feat_dim):
    """Deterministic synthetic init for the three embed branches (nn.Linear-style)."""
    params = {}
    for name in ("s", "ema", "t"):
        key, k1, k2, k3, k4 = jax.random.split(key, 5)
        bound1 = 1.0 / jnp.sqrt(d)
        w1 = jax.random.uniform(k1, (d, d), jnp.float32, -bound1, bound1)
        b1 = jax.random.uniform(k2, (d,), jnp.float32, -bound1, bound1)
        w2 = jax.random.uniform(k3, (d, feat_dim), jnp.float32, -bound1, bound1)
        b2 = jax.random.uniform(k4, (feat_dim,), jnp.float32, -bound1, bound1)
        params[name] = (w1, b1, w2, b2)
    return params


if __name__ == "__main__":
    key = jax.random.PRNGKey(0)

    # Small shapes consistent with the module:
    #   batch=8, s_dim = t_dim = C*H*W = 2*4*4 = 32, feat_dim = 128
    B, C, H, W = 8, 2, 4, 4
    D = C * H * W
    FEAT = 128

    key, ks, ke, kt, kp = jax.random.split(key, 5)
    f_s = jax.random.normal(ks, (B, C, H, W), jnp.float32)
    f_ema = jax.random.normal(ke, (B, C, H, W), jnp.float32)
    f_t = jax.random.normal(kt, (B, C, H, W), jnp.float32)

    params = init_params(kp, D, FEAT)
    prepared = prepare_params(params)          # ONE-TIME weight pad/stack/cast

    out_s, out_ema, out_t = cmo_ematec_forward(f_s, f_ema, f_t, prepared)
    jax.block_until_ready((out_s, out_ema, out_t))

    # Lightweight sanity check against a pure-f32 JAX reference.
    def ref_branch(x, w1, b1, w2, b2):
        x = x.reshape(x.shape[0], -1)
        h = jnp.maximum(x @ w1 + b1, 0.0)
        z = h @ w2 + b2
        n = jnp.maximum(jnp.linalg.norm(z, axis=1, keepdims=True), 1e-12)
        return z / n

    ref_s = ref_branch(f_s, *params["s"])
    ref_ema = ref_branch(f_ema, *params["ema"])
    ref_t = ref_branch(f_t, *params["t"])

    # bf16 matmul operands vs. f32 reference -> loosened tolerance (unit-norm outputs).
    assert jnp.max(jnp.abs(out_s - ref_s)) < 3e-2
    assert jnp.max(jnp.abs(out_ema - ref_ema)) < 3e-2
    assert jnp.max(jnp.abs(out_t - ref_t)) < 3e-2

    print("KERNEL_OK")
</pallas_src>

<mosaic_0001>
module attributes {stable_mosaic.version = 11 : i64} {
  func.func @_fused_embed_kernel(%arg0: i32, %arg1: i32, %arg2: i32, %arg3: memref<16x128xf32, #tpu.memory_space<vmem>>, %arg4: memref<16x128xf32, #tpu.memory_space<vmem>>, %arg5: memref<16x128xf32, #tpu.memory_space<vmem>>, %arg6: memref<1x128x128xbf16, #tpu.memory_space<vmem>>, %arg7: memref<1x1x128xf32, #tpu.memory_space<vmem>>, %arg8: memref<1x128x256xbf16, #tpu.memory_space<vmem>>, %arg9: memref<1x1x256xf32, #tpu.memory_space<vmem>>, %arg10: memref<1x16x256xf32, #tpu.memory_space<vmem>>, %arg11: memref<16x128xf32, #tpu.memory_space<vmem>>) attributes {dimension_semantics = [#tpu.dimension_semantics<parallel>, #tpu.dimension_semantics<parallel>, #tpu.dimension_semantics<arbitrary>], iteration_bounds = array<i64: 3, 1, 1>, scalar_prefetch = 0 : i64, scratch_operands = 1 : i64, tpu.core_type = #tpu.core_type<tc>, window_params = [{transform_indices = @transform_0, window_bounds = array<i64: 16, 128>}, {transform_indices = @transform_1, window_bounds = array<i64: 16, 128>}, {transform_indices = @transform_2, window_bounds = array<i64: 16, 128>}, {transform_indices = @transform_3, window_bounds = array<i64: 1, 128, 128>}, {transform_indices = @transform_4, window_bounds = array<i64: 1, 1, 128>}, {pipeline_mode = #tpu.pipeline_mode<synchronous>, transform_indices = @transform_5, window_bounds = array<i64: 1, 128, 256>}, {transform_indices = @transform_6, window_bounds = array<i64: 1, 1, 256>}, {transform_indices = @transform_7, window_bounds = array<i64: 1, 16, 256>}]} {
    %c0_i32 = arith.constant 0 : i32
    %0 = arith.cmpi eq, %arg2, %c0_i32 : i32
    %1 = arith.extui %0 : i1 to i32
    %c0_i32_0 = arith.constant 0 : i32
    %2 = arith.cmpi ne, %1, %c0_i32_0 : i32
    scf.if %2 {
      %c0_16 = arith.constant 0 : index
      %c0_17 = arith.constant 0 : index
      %c0_18 = arith.constant 0 : index
      %20 = vector.load %arg7[%c0_16, %c0_17, %c0_18] : memref<1x1x128xf32, #tpu.memory_space<vmem>>, vector<1x1x128xf32>
      %21 = vector.shape_cast %20 : vector<1x1x128xf32> to vector<1x128xf32>
      %22 = vector.shape_cast %21 : vector<1x128xf32> to vector<1x128xf32>
      %23 = vector.broadcast %22 : vector<1x128xf32> to vector<16x128xf32>
      %c0_19 = arith.constant 0 : index
      %c0_20 = arith.constant 0 : index
      %24 = vector.load %arg11[%c0_19, %c0_20] : memref<16x128xf32, #tpu.memory_space<vmem>>, vector<16x128xf32>
      tpu.vector_store %arg11[%c0_19, %c0_20], %23 {strides = array<i32>} : memref<16x128xf32, #tpu.memory_space<vmem>>, vector<16x128xf32>,
    } else {
    }
    %c0_i32_1 = arith.constant 0 : i32
    %3 = arith.cmpi eq, %arg0, %c0_i32_1 : i32
    %c0 = arith.constant 0 : index
    %c0_2 = arith.constant 0 : index
    %4 = vector.load %arg3[%c0, %c0_2] : memref<16x128xf32, #tpu.memory_space<vmem>>, vector<16x128xf32>
    %c1_i32 = arith.constant 1 : i32
    %5 = arith.cmpi eq, %arg0, %c1_i32 : i32
    %c0_3 = arith.constant 0 : index
    %c0_4 = arith.constant 0 : index
    %6 = vector.load %arg4[%c0_3, %c0_4] : memref<16x128xf32, #tpu.memory_space<vmem>>, vector<16x128xf32>
    %c0_5 = arith.constant 0 : index
    %c0_6 = arith.constant 0 : index
    %7 = vector.load %arg5[%c0_5, %c0_6] : memref<16x128xf32, #tpu.memory_space<vmem>>, vector<16x128xf32>
    %8 = arith.select %5, %6, %7 : vector<16x128xf32>
    %9 = arith.select %3, %4, %8 : vector<16x128xf32>
    %c0_7 = arith.constant 0 : index
    %c0_8 = arith.constant 0 : index
    %10 = vector.load %arg11[%c0_7, %c0_8] : memref<16x128xf32, #tpu.memory_space<vmem>>, vector<16x128xf32>
    %11 = arith.truncf %9 : vector<16x128xf32> to vector<16x128xbf16>
    %c0_9 = arith.constant 0 : index
    %c0_10 = arith.constant 0 : index
    %c0_11 = arith.constant 0 : index
    %12 = vector.load %arg6[%c0_9, %c0_10, %c0_11] : memref<1x128x128xbf16, #tpu.memory_space<vmem>>, vector<1x128x128xbf16>
    %13 = vector.shape_cast %12 : vector<1x128x128xbf16> to vector<128x128xbf16>
    %cst = arith.constant dense<0.000000e+00> : vector<16x128xf32>
    %14 = tpu.matmul %11, %13, %cst {dimension_numbers = #tpu.dot_dimension_numbers<[1], [0], [0], [1], [0, 0, 1, 1], [], []>} : vector<16x128xbf16>, vector<128x128xbf16>, vector<16x128xf32> -> vector<16x128xf32>
    %15 = arith.addf %10, %14 : vector<16x128xf32>
    %c0_12 = arith.constant 0 : index
    %c0_13 = arith.constant 0 : index
    %16 = vector.load %arg11[%c0_12, %c0_13] : memref<16x128xf32, #tpu.memory_space<vmem>>, vector<16x128xf32>
    tpu.vector_store %arg11[%c0_12, %c0_13], %15 {strides = array<i32>} : memref<16x128xf32, #tpu.memory_space<vmem>>, vector<16x128xf32>,
    %c0_i32_14 = arith.constant 0 : i32
    %17 = arith.cmpi eq, %arg2, %c0_i32_14 : i32
    %18 = arith.extui %17 : i1 to i32
    %c0_i32_15 = arith.constant 0 : i32
    %19 = arith.cmpi ne, %18, %c0_i32_15 : i32
    scf.if %19 {
      %c0_16 = arith.constant 0 : index
      %c0_17 = arith.constant 0 : index
      %20 = vector.load %arg11[%c0_16, %c0_17] : memref<16x128xf32, #tpu.memory_space<vmem>>, vector<16x128xf32>
      %cst_18 = arith.constant 0.000000e+00 : f32
      %21 = vector.broadcast %cst_18 : f32 to vector<16x128xf32>
      %22 = arith.maximumf %20, %21 : vector<16x128xf32>
      %23 = arith.truncf %22 : vector<16x128xf32> to vector<16x128xbf16>
      %c0_19 = arith.constant 0 : index
      %c0_20 = arith.constant 0 : index
      %c0_21 = arith.constant 0 : index
      %24 = vector.load %arg8[%c0_19, %c0_20, %c0_21] : memref<1x128x256xbf16, #tpu.memory_space<vmem>>, vector<1x128x256xbf16>
      %25 = vector.shape_cast %24 : vector<1x128x256xbf16> to vector<128x256xbf16>
      %cst_22 = arith.constant dense<0.000000e+00> : vector<16x256xf32>
      %26 = tpu.matmul %23, %25, %cst_22 {dimension_numbers = #tpu.dot_dimension_numbers<[1], [0], [0], [1], [0, 0, 1, 1], [], []>} : vector<16x128xbf16>, vector<128x256xbf16>, vector<16x256xf32> -> vector<16x256xf32>
      %c0_23 = arith.constant 0 : index
      %c0_24 = arith.constant 0 : index
      %c0_25 = arith.constant 0 : index
      %27 = vector.load %arg9[%c0_23, %c0_24, %c0_25] : memref<1x1x256xf32, #tpu.memory_space<vmem>>, vector<1x1x256xf32>
      %28 = vector.shape_cast %27 : vector<1x1x256xf32> to vector<1x256xf32>
      %29 = vector.broadcast %28 : vector<1x256xf32> to vector<16x256xf32>
      %30 = arith.addf %26, %29 : vector<16x256xf32>
      %31 = arith.mulf %30, %30 : vector<16x256xf32>
      %cst_26 = arith.constant dense<0.000000e+00> : vector<16xf32>
      %32 = vector.multi_reduction <add>, %31, %cst_26 [1] : vector<16x256xf32> to vector<16xf32>
      %33 = vector.shape_cast %32 : vector<16xf32> to vector<16x1xf32>
      %cst_27 = arith.constant 1.000000e-24 : f32
      %34 = vector.broadcast %cst_27 : f32 to vector<16x1xf32>
      %35 = arith.maximumf %33, %34 : vector<16x1xf32>
      %36 = math.rsqrt %35 : vector<16x1xf32>
      %37 = vector.broadcast %36 : vector<16x1xf32> to vector<16x256xf32>
      %38 = arith.mulf %30, %37 : vector<16x256xf32>
      %c0_28 = arith.constant 0 : index
      %c0_29 = arith.constant 0 : index
      %c0_30 = arith.constant 0 : index
      %39 = vector.load %arg10[%c0_28, %c0_29, %c0_30] : memref<1x16x256xf32, #tpu.memory_space<vmem>>, vector<1x16x256xf32>
      %40 = vector.shape_cast %39 : vector<1x16x256xf32> to vector<16x256xf32>
      %41 = vector.shape_cast %38 : vector<16x256xf32> to vector<1x16x256xf32>
      tpu.vector_store %arg10[%c0_28, %c0_29, %c0_30], %41 {strides = array<i32>} : memref<1x16x256xf32, #tpu.memory_space<vmem>>, vector<1x16x256xf32>,
    } else {
    }
    return
  }
  func.func @transform_0(%arg0: i32, %arg1: i32, %arg2: i32) -> (i32, i32) {
    %c0_i32 = arith.constant 0 : i32
    %0 = arith.cmpi eq, %arg0, %c0_i32 : i32
    %c0_i32_0 = arith.constant 0 : i32
    %1 = arith.select %0, %arg1, %c0_i32_0 : i32
    %c0_i32_1 = arith.constant 0 : i32
    %2 = arith.cmpi eq, %arg0, %c0_i32_1 : i32
    %c0_i32_2 = arith.constant 0 : i32
    %3 = arith.select %2, %arg2, %c0_i32_2 : i32
    %c0_i32_3 = arith.constant 0 : i32
    return %1, %3 : i32, i32
  }
  func.func @transform_1(%arg0: i32, %arg1: i32, %arg2: i32) -> (i32, i32) {
    %c1_i32 = arith.constant 1 : i32
    %0 = arith.cmpi eq, %arg0, %c1_i32 : i32
    %c0_i32 = arith.constant 0 : i32
    %1 = arith.select %0, %arg1, %c0_i32 : i32
    %c1_i32_0 = arith.constant 1 : i32
    %2 = arith.cmpi eq, %arg0, %c1_i32_0 : i32
    %c0_i32_1 = arith.constant 0 : i32
    %3 = arith.select %2, %arg2, %c0_i32_1 : i32
    %c0_i32_2 = arith.constant 0 : i32
    return %1, %3 : i32, i32
  }
  func.func @transform_2(%arg0: i32, %arg1: i32, %arg2: i32) -> (i32, i32) {
    %c2_i32 = arith.constant 2 : i32
    %0 = arith.cmpi eq, %arg0, %c2_i32 : i32
    %c0_i32 = arith.constant 0 : i32
    %1 = arith.select %0, %arg1, %c0_i32 : i32
    %c2_i32_0 = arith.constant 2 : i32
    %2 = arith.cmpi eq, %arg0, %c2_i32_0 : i32
    %c0_i32_1 = arith.constant 0 : i32
    %3 = arith.select %2, %arg2, %c0_i32_1 : i32
    %c0_i32_2 = arith.constant 0 : i32
    return %1, %3 : i32, i32
  }
  func.func @transform_3(%arg0: i32, %arg1: i32, %arg2: i32) -> (i32, i32, i32) {
    %c0_i32 = arith.constant 0 : i32
    %c0_i32_0 = arith.constant 0 : i32
    return %arg0, %arg2, %c0_i32 : i32, i32, i32
  }
  func.func @transform_4(%arg0: i32, %arg1: i32, %arg2: i32) -> (i32, i32, i32) {
    %c0_i32 = arith.constant 0 : i32
    %c0_i32_0 = arith.constant 0 : i32
    %c0_i32_1 = arith.constant 0 : i32
    return %arg0, %c0_i32, %c0_i32_0 : i32, i32, i32
  }
  func.func @transform_5(%arg0: i32, %arg1: i32, %arg2: i32) -> (i32, i32, i32) {
    %c0_i32 = arith.constant 0 : i32
    %c0_i32_0 = arith.constant 0 : i32
    %c0_i32_1 = arith.constant 0 : i32
    return %arg0, %c0_i32, %c0_i32_0 : i32, i32, i32
  }
  func.func @transform_6(%arg0: i32, %arg1: i32, %arg2: i32) -> (i32, i32, i32) {
    %c0_i32 = arith.constant 0 : i32
    %c0_i32_0 = arith.constant 0 : i32
    %c0_i32_1 = arith.constant 0 : i32
    return %arg0, %c0_i32, %c0_i32_0 : i32, i32, i32
  }
  func.func @transform_7(%arg0: i32, %arg1: i32, %arg2: i32) -> (i32, i32, i32) {
    %c0_i32 = arith.constant 0 : i32
    %c0_i32_0 = arith.constant 0 : i32
    return %arg0, %arg1, %c0_i32 : i32, i32, i32
  }
}

module attributes {stable_mosaic.version = 11 : i64} {
  func.func @_fused_embed_kernel(%arg0: i32, %arg1: i32, %arg2: i32, %arg3: memref<16x128xf32, #tpu.memory_space<vmem>>, %arg4: memref<16x128xf32, #tpu.memory_space<vmem>>, %arg5: memref<16x128xf32, #tpu.memory_space<vmem>>, %arg6: memref<1x128x128xbf16, #tpu.memory_space<vmem>>, %arg7: memref<1x1x128xf32, #tpu.memory_space<vmem>>, %arg8: memref<1x128x256xbf16, #tpu.memory_space<vmem>>, %arg9: memref<1x1x256xf32, #tpu.memory_space<vmem>>, %arg10: memref<1x16x256xf32, #tpu.memory_space<vmem>>, %arg11: memref<16x128xf32, #tpu.memory_space<vmem>>) attributes {dimension_semantics = [#tpu.dimension_semantics<parallel>, #tpu.dimension_semantics<parallel>, #tpu.dimension_semantics<arbitrary>], iteration_bounds = array<i64: 3, 1, 1>, scalar_prefetch = 0 : i64, scratch_operands = 1 : i64, tpu.core_type = #tpu.core_type<tc>, window_params = [{transform_indices = @transform_0, window_bounds = array<i64: 16, 128>}, {transform_indices = @transform_1, window_bounds = array<i64: 16, 128>}, {transform_indices = @transform_2, window_bounds = array<i64: 16, 128>}, {transform_indices = @transform_3, window_bounds = array<i64: 1, 128, 128>}, {transform_indices = @transform_4, window_bounds = array<i64: 1, 1, 128>}, {transform_indices = @transform_5, window_bounds = array<i64: 1, 128, 256>}, {transform_indices = @transform_6, window_bounds = array<i64: 1, 1, 256>}, {transform_indices = @transform_7, window_bounds = array<i64: 1, 16, 256>}]} {
    %c0_i32 = arith.constant 0 : i32
    %0 = arith.cmpi eq, %arg2, %c0_i32 : i32
    %1 = arith.extui %0 : i1 to i32
    %c0_i32_0 = arith.constant 0 : i32
    %2 = arith.cmpi ne, %1, %c0_i32_0 : i32
    scf.if %2 {
      %c0_16 = arith.constant 0 : index
      %c0_17 = arith.constant 0 : index
      %c0_18 = arith.constant 0 : index
      %20 = vector.load %arg7[%c0_16, %c0_17, %c0_18] : memref<1x1x128xf32, #tpu.memory_space<vmem>>, vector<1x1x128xf32>
      %21 = vector.shape_cast %20 : vector<1x1x128xf32> to vector<1x128xf32>
      %22 = vector.shape_cast %21 : vector<1x128xf32> to vector<1x128xf32>
      %23 = vector.broadcast %22 : vector<1x128xf32> to vector<16x128xf32>
      %c0_19 = arith.constant 0 : index
      %c0_20 = arith.constant 0 : index
      %24 = vector.load %arg11[%c0_19, %c0_20] : memref<16x128xf32, #tpu.memory_space<vmem>>, vector<16x128xf32>
      tpu.vector_store %arg11[%c0_19, %c0_20], %23 {strides = array<i32>} : memref<16x128xf32, #tpu.memory_space<vmem>>, vector<16x128xf32>,
    } else {
    }
    %c0_i32_1 = arith.constant 0 : i32
    %3 = arith.cmpi eq, %arg0, %c0_i32_1 : i32
    %c0 = arith.constant 0 : index
    %c0_2 = arith.constant 0 : index
    %4 = vector.load %arg3[%c0, %c0_2] : memref<16x128xf32, #tpu.memory_space<vmem>>, vector<16x128xf32>
    %c1_i32 = arith.constant 1 : i32
    %5 = arith.cmpi eq, %arg0, %c1_i32 : i32
    %c0_3 = arith.constant 0 : index
    %c0_4 = arith.constant 0 : index
    %6 = vector.load %arg4[%c0_3, %c0_4] : memref<16x128xf32, #tpu.memory_space<vmem>>, vector<16x128xf32>
    %c0_5 = arith.constant 0 : index
    %c0_6 = arith.constant 0 : index
    %7 = vector.load %arg5[%c0_5, %c0_6] : memref<16x128xf32, #tpu.memory_space<vmem>>, vector<16x128xf32>
    %8 = arith.select %5, %6, %7 : vector<16x128xf32>
    %9 = arith.select %3, %4, %8 : vector<16x128xf32>
    %c0_7 = arith.constant 0 : index
    %c0_8 = arith.constant 0 : index
    %10 = vector.load %arg11[%c0_7, %c0_8] : memref<16x128xf32, #tpu.memory_space<vmem>>, vector<16x128xf32>
    %11 = arith.truncf %9 : vector<16x128xf32> to vector<16x128xbf16>
    %c0_9 = arith.constant 0 : index
    %c0_10 = arith.constant 0 : index
    %c0_11 = arith.constant 0 : index
    %12 = vector.load %arg6[%c0_9, %c0_10, %c0_11] : memref<1x128x128xbf16, #tpu.memory_space<vmem>>, vector<1x128x128xbf16>
    %13 = vector.shape_cast %12 : vector<1x128x128xbf16> to vector<128x128xbf16>
    %cst = arith.constant dense<0.000000e+00> : vector<16x128xf32>
    %14 = tpu.matmul %11, %13, %cst {dimension_numbers = #tpu.dot_dimension_numbers<[1], [0], [0], [1], [0, 0, 1, 1], [], []>} : vector<16x128xbf16>, vector<128x128xbf16>, vector<16x128xf32> -> vector<16x128xf32>
    %15 = arith.addf %10, %14 : vector<16x128xf32>
    %c0_12 = arith.constant 0 : index
    %c0_13 = arith.constant 0 : index
    %16 = vector.load %arg11[%c0_12, %c0_13] : memref<16x128xf32, #tpu.memory_space<vmem>>, vector<16x128xf32>
    tpu.vector_store %arg11[%c0_12, %c0_13], %15 {strides = array<i32>} : memref<16x128xf32, #tpu.memory_space<vmem>>, vector<16x128xf32>,
    %c0_i32_14 = arith.constant 0 : i32
    %17 = arith.cmpi eq, %arg2, %c0_i32_14 : i32
    %18 = arith.extui %17 : i1 to i32
    %c0_i32_15 = arith.constant 0 : i32
    %19 = arith.cmpi ne, %18, %c0_i32_15 : i32
    scf.if %19 {
      %c0_16 = arith.constant 0 : index
      %c0_17 = arith.constant 0 : index
      %20 = vector.load %arg11[%c0_16, %c0_17] : memref<16x128xf32, #tpu.memory_space<vmem>>, vector<16x128xf32>
      %cst_18 = arith.constant 0.000000e+00 : f32
      %21 = vector.broadcast %cst_18 : f32 to vector<16x128xf32>
      %22 = arith.maximumf %20, %21 : vector<16x128xf32>
      %23 = arith.truncf %22 : vector<16x128xf32> to vector<16x128xbf16>
      %c0_19 = arith.constant 0 : index
      %c0_20 = arith.constant 0 : index
      %c0_21 = arith.constant 0 : index
      %24 = vector.load %arg8[%c0_19, %c0_20, %c0_21] : memref<1x128x256xbf16, #tpu.memory_space<vmem>>, vector<1x128x256xbf16>
      %25 = vector.shape_cast %24 : vector<1x128x256xbf16> to vector<128x256xbf16>
      %cst_22 = arith.constant dense<0.000000e+00> : vector<16x256xf32>
      %26 = tpu.matmul %23, %25, %cst_22 {dimension_numbers = #tpu.dot_dimension_numbers<[1], [0], [0], [1], [0, 0, 1, 1], [], []>} : vector<16x128xbf16>, vector<128x256xbf16>, vector<16x256xf32> -> vector<16x256xf32>
      %c0_23 = arith.constant 0 : index
      %c0_24 = arith.constant 0 : index
      %c0_25 = arith.constant 0 : index
      %27 = vector.load %arg9[%c0_23, %c0_24, %c0_25] : memref<1x1x256xf32, #tpu.memory_space<vmem>>, vector<1x1x256xf32>
      %28 = vector.shape_cast %27 : vector<1x1x256xf32> to vector<1x256xf32>
      %29 = vector.broadcast %28 : vector<1x256xf32> to vector<16x256xf32>
      %30 = arith.addf %26, %29 : vector<16x256xf32>
      %31 = arith.mulf %30, %30 : vector<16x256xf32>
      %cst_26 = arith.constant dense<0.000000e+00> : vector<16xf32>
      %32 = vector.multi_reduction <add>, %31, %cst_26 [1] : vector<16x256xf32> to vector<16xf32>
      %33 = vector.shape_cast %32 : vector<16xf32> to vector<16x1xf32>
      %cst_27 = arith.constant 1.000000e-24 : f32
      %34 = vector.broadcast %cst_27 : f32 to vector<16x1xf32>
      %35 = arith.maximumf %33, %34 : vector<16x1xf32>
      %36 = math.rsqrt %35 : vector<16x1xf32>
      %37 = vector.broadcast %36 : vector<16x1xf32> to vector<16x256xf32>
      %38 = arith.mulf %30, %37 : vector<16x256xf32>
      %c0_28 = arith.constant 0 : index
      %c0_29 = arith.constant 0 : index
      %c0_30 = arith.constant 0 : index
      %39 = vector.load %arg10[%c0_28, %c0_29, %c0_30] : memref<1x16x256xf32, #tpu.memory_space<vmem>>, vector<1x16x256xf32>
      %40 = vector.shape_cast %39 : vector<1x16x256xf32> to vector<16x256xf32>
      %41 = vector.shape_cast %38 : vector<16x256xf32> to vector<1x16x256xf32>
      tpu.vector_store %arg10[%c0_28, %c0_29, %c0_30], %41 {strides = array<i32>} : memref<1x16x256xf32, #tpu.memory_space<vmem>>, vector<1x16x256xf32>,
    } else {
    }
    return
  }
  func.func @transform_0(%arg0: i32, %arg1: i32, %arg2: i32) -> (i32, i32) {
    %c0_i32 = arith.constant 0 : i32
    %0 = arith.cmpi eq, %arg0, %c0_i32 : i32
    %c0_i32_0 = arith.constant 0 : i32
    %1 = arith.select %0, %arg1, %c0_i32_0 : i32
    %c0_i32_1 = arith.constant 0 : i32
    %2 = arith.cmpi eq, %arg0, %c0_i32_1 : i32
    %c0_i32_2 = arith.constant 0 : i32
    %3 = arith.select %2, %arg2, %c0_i32_2 : i32
    %c0_i32_3 = arith.constant 0 : i32
    return %1, %3 : i32, i32
  }
  func.func @transform_1(%arg0: i32, %arg1: i32, %arg2: i32) -> (i32, i32) {
    %c1_i32 = arith.constant 1 : i32
    %0 = arith.cmpi eq, %arg0, %c1_i32 : i32
    %c0_i32 = arith.constant 0 : i32
    %1 = arith.select %0, %arg1, %c0_i32 : i32
    %c1_i32_0 = arith.constant 1 : i32
    %2 = arith.cmpi eq, %arg0, %c1_i32_0 : i32
    %c0_i32_1 = arith.constant 0 : i32
    %3 = arith.select %2, %arg2, %c0_i32_1 : i32
    %c0_i32_2 = arith.constant 0 : i32
    return %1, %3 : i32, i32
  }
  func.func @transform_2(%arg0: i32, %arg1: i32, %arg2: i32) -> (i32, i32) {
    %c2_i32 = arith.constant 2 : i32
    %0 = arith.cmpi eq, %arg0, %c2_i32 : i32
    %c0_i32 = arith.constant 0 : i32
    %1 = arith.select %0, %arg1, %c0_i32 : i32
    %c2_i32_0 = arith.constant 2 : i32
    %2 = arith.cmpi eq, %arg0, %c2_i32_0 : i32
    %c0_i32_1 = arith.constant 0 : i32
    %3 = arith.select %2, %arg2, %c0_i32_1 : i32
    %c0_i32_2 = arith.constant 0 : i32
    return %1, %3 : i32, i32
  }
  func.func @transform_3(%arg0: i32, %arg1: i32, %arg2: i32) -> (i32, i32, i32) {
    %c0_i32 = arith.constant 0 : i32
    %c0_i32_0 = arith.constant 0 : i32
    return %arg0, %arg2, %c0_i32 : i32, i32, i32
  }
  func.func @transform_4(%arg0: i32, %arg1: i32, %arg2: i32) -> (i32, i32, i32) {
    %c0_i32 = arith.constant 0 : i32
    %c0_i32_0 = arith.constant 0 : i32
    %c0_i32_1 = arith.constant 0 : i32
    return %arg0, %c0_i32, %c0_i32_0 : i32, i32, i32
  }
  func.func @transform_5(%arg0: i32, %arg1: i32, %arg2: i32) -> (i32, i32, i32) {
    %c0_i32 = arith.constant 0 : i32
    %c0_i32_0 = arith.constant 0 : i32
    %c0_i32_1 = arith.constant 0 : i32
    return %arg0, %c0_i32, %c0_i32_0 : i32, i32, i32
  }
  func.func @transform_6(%arg0: i32, %arg1: i32, %arg2: i32) -> (i32, i32, i32) {
    %c0_i32 = arith.constant 0 : i32
    %c0_i32_0 = arith.constant 0 : i32
    %c0_i32_1 = arith.constant 0 : i32
    return %arg0, %c0_i32, %c0_i32_0 : i32, i32, i32
  }
  func.func @transform_7(%arg0: i32, %arg1: i32, %arg2: i32) -> (i32, i32, i32) {
    %c0_i32 = arith.constant 0 : i32
    %c0_i32_0 = arith.constant 0 : i32
    return %arg0, %arg1, %c0_i32 : i32, i32, i32
  }
}

</mosaic_0001>

<llo_original>
// kernel: tpu_custom_call.1
$region0: #{tpu_custom_call.1}
  #allocation0 [shape = 'u32[]', space=smem, size = 0x4, offset = 0x4, fixed_abs, tag = 'smem constant byte address 0x4 - core index']
  #allocation1 [shape = 'u32[144,128]{1,0:T(1,128)}', space=vmem, size = 0x12000, scoped, tag = 'internal scratch']
  #allocation2 [shape = 'f32[16,128]{1,0:T(8,128)}', space=vmem, size = 0x2000, scoped, tag = 'scratch operand']
  %s0 = inlined_call_operand.hbm [shape: f32[16,128], index: 0, kind: input, shape index: {}]
  %s1 = inlined_call_operand.hbm [shape: f32[16,128], index: 1, kind: input, shape index: {}]
  %s2 = inlined_call_operand.hbm [shape: f32[16,128], index: 2, kind: input, shape index: {}]
  %s3 = inlined_call_operand.hbm [shape: bf16[3,128,128], index: 3, kind: input, shape index: {}]
  %s4 = inlined_call_operand.vmem [shape: f32[3,1,128], index: 4, kind: input, shape index: {}]
  %s5 = inlined_call_operand.hbm [shape: bf16[3,128,256], index: 5, kind: input, shape index: {}]
  %s6 = inlined_call_operand.vmem [shape: f32[3,1,256], index: 6, kind: input, shape index: {}]
  %s7 = inlined_call_operand.hbm [shape: f32[3,16,256], index: 7, kind: output, shape index: {}]
  %s8 = sld [smem:[#allocation0]]
  $region89: #{tpu_custom_call.1} parent=0
    _
  %s10 = ssub.s32 1, %s8
  %s11 = scalar_select 0, %s10, %s8
  $region1: #{tpu_custom_call.1} parent=0
    #allocation3 [shape = 'u8[16384]{0}', space=vmem, size = 0x4000, scoped, tag = 'input window, operand 0']
    #allocation4 [shape = 's32[2]{0}', space=sflag, size = 0x8, scoped, tag = 'scoped memory for tpu_custom_call.1']
    #allocation5 [shape = 's32[2]{0}', space=sflag, size = 0x8, scoped, tag = 'scoped memory for tpu_custom_call.1']
    #allocation6 [shape = 'u8[16384]{0}', space=vmem, size = 0x4000, scoped, tag = 'input window, operand 1']
    #allocation7 [shape = 's32[2]{0}', space=sflag, size = 0x8, scoped, tag = 'scoped memory for tpu_custom_call.1']
    #allocation8 [shape = 'u8[16384]{0}', space=vmem, size = 0x4000, scoped, tag = 'input window, operand 2']
    #allocation9 [shape = 'u8[65536]{0}', space=vmem, size = 0x10000, scoped, tag = 'input window, operand 3']
    #allocation10 [shape = 's32[2]{0}', space=sflag, size = 0x8, scoped, tag = 'scoped memory for tpu_custom_call.1']
    #allocation11 [shape = 'u8[65536]{0}', space=vmem, size = 0x10000, scoped, tag = 'input window, operand 5, single buffered']
    #allocation12 [shape = 'u8[32768]{0}', space=vmem, size = 0x8000, scoped, tag = 'output window, operand 0']
    %12 = vsyncpa [#allocation4], 0
    %s13 = scalar_lea.sflag [#allocation4], 1
    %14 = vsyncpa %s13, 0
    %15 = vsyncpa [#allocation7], 0
    %s16 = scalar_lea.sflag [#allocation7], 1
    %17 = vsyncpa %s16, 0
    %18 = vsyncpa [#allocation10], 0
    %s19 = scalar_lea.sflag [#allocation10], 1
    %20 = vsyncpa %s19, 0
    %21 = vsyncpa [#allocation5], 0
    %s22 = scalar_lea.sflag [#allocation5], 1
    %23 = vsyncpa %s22, 0
    loop: start=0, step=1, limit=5
    $region2: #{tpu_custom_call.1} parent=1 // loop_pre_header
      _
    $region3: #{tpu_custom_call.1} parent=1 // loop_header
      %s25 = sphi 0, %s29
      %p26 = scmp.ge.s32.totalorder %s25, 5
      %s32 = sphi 0, %s51
      %s33 = sphi 0, %s47
      %s34 = sphi 0, %s43
      %s35 = sphi 0, %s32
      %s36 = sphi 0, %s33
      %s37 = sphi 0, %s34
      %s38 = sphi 0, %s35
      %s39 = sphi 0, %s36
      %s40 = sphi 0, %s37
      %s62 = sphi 0, %s64
      %s65 = sphi 0, %s62
      %s66 = sphi 0, %s65
      %s82 = sphi 0, %s66
      %s96 = sphi 0, %s98
      %s99 = sphi 0, %s96
      %s100 = sphi 0, %s99
      %s116 = sphi 0, %s100
      %s130 = sphi 0, %s132
      %s133 = sphi 0, %s130
      %s134 = sphi 0, %s133
      %s150 = sphi 0, %s134
      %s158 = sphi 0, %s160
      %s161 = sphi 0, %s158
      %s162 = sphi 0, %s161
      %s178 = sphi 0, %s162
      %s184 = sphi 0, %s186
      %s187 = sphi 0, %s184
      %s188 = sphi 0, %s187
      %s204 = sphi 0, %s188
      %s210 = sphi 0, %s212
      %s213 = sphi 0, %s210
      %s214 = sphi 0, %s213
      %s230 = sphi 0, %s214
      %s236 = sphi 0, %s238
      %s239 = sphi 0, %s236
      %s240 = sphi 0, %s239
      %s256 = sphi 0, %s240
      %s264 = sphi 0, %s266
      %s267 = sphi 0, %s264
      %s268 = sphi 0, %s267
      %s284 = sphi 0, %s268
    $region4: #{tpu_custom_call.1} parent=1 // loop_header_branch
      %28 = sbr.rel (%p26) target = $region8
    $region5: #{tpu_custom_call.1} parent=1 // loop_body
      %s30 = ssub.s32 %s25, 1
      %s31 = ssub.s32 %s25, 2
      %s41 = sadd.s32 1, %s34
      %p42 = scmp.ge.s32.totalorder %s41, 1
      %s43 = scalar_select %p42, 0, %s41
      %s44 = sadd.s32 1, %s33
      %s45 = scalar_select %p42, %s44, %s33
      %p46 = scmp.ge.s32.totalorder %s45, 1
      %s47 = scalar_select %p46, 0, %s45
      %s48 = sadd.s32 1, %s32
      %s49 = scalar_select %p46, %s48, %s32
      %p50 = scmp.ge.s32.totalorder %s49, 3
      %s51 = scalar_select %p50, 0, %s49
      %p52 = scmp.eq.s32.totalorder %s32, 0
      %s53 = scalar_select %p52, %s33, 0
      %s54 = scalar_select %p52, %s34, 0
      %p55 = scmp.eq.s32.totalorder %s51, 0
      %s56 = scalar_select %p55, %s47, 0
      %s57 = scalar_select %p55, %s43, 0
      %s58 = ssub.s32 %s53, %s56
      %s59 = ssub.s32 %s54, %s57
      %s60 = sor.u32 %s58, %s59
      %p61 = scmp.eq.s32.totalorder %s60, 0
      %s63 = sadd.s32 %s62, 1
      %s64 = scalar_select %p61, %s62, %s63
      %p67 = pneg %p61
      %p68 = scmp.eq.s32.totalorder %s25, 2
      %p69 = por %p67, %p68
      %p70 = scmp.ne.s32.totalorder %s62, %s65
      %p71 = scmp.eq.s32.totalorder %s25, 0
      %p72 = por %p70, %p71
      %p73 = scmp.ne.s32.totalorder %s62, %s65
      %p74 = scmp.eq.s32.totalorder %s30, 2
      %p75 = por %p73, %p74
      %p76 = scmp.ne.s32.totalorder %s65, %s66
      %p77 = scmp.eq.s32.totalorder %s30, 0
      %p78 = por %p76, %p77
      %p79 = scmp.ne.s32.totalorder %s65, %s66
      %p80 = scmp.eq.s32.totalorder %s31, 2
      %p81 = por %p79, %p80
      %p83 = scmp.ne.s32.totalorder %s66, %s82
      %p84 = scmp.eq.s32.totalorder %s31, 0
      %p85 = por %p83, %p84
      %p86 = scmp.eq.s32.totalorder %s32, 1
      %s87 = scalar_select %p86, %s33, 0
      %s88 = scalar_select %p86, %s34, 0
      %p89 = scmp.eq.s32.totalorder %s51, 1
      %s90 = scalar_select %p89, %s47, 0
      %s91 = scalar_select %p89, %s43, 0
      %s92 = ssub.s32 %s87, %s90
      %s93 = ssub.s32 %s88, %s91
      %s94 = sor.u32 %s92, %s93
      %p95 = scmp.eq.s32.totalorder %s94, 0
      %s97 = sadd.s32 %s96, 1
      %s98 = scalar_select %p95, %s96, %s97
      %p101 = pneg %p95
      %p102 = scmp.eq.s32.totalorder %s25, 2
      %p103 = por %p101, %p102
      %p104 = scmp.ne.s32.totalorder %s96, %s99
      %p105 = scmp.eq.s32.totalorder %s25, 0
      %p106 = por %p104, %p105
      %p107 = scmp.ne.s32.totalorder %s96, %s99
      %p108 = scmp.eq.s32.totalorder %s30, 2
      %p109 = por %p107, %p108
      %p110 = scmp.ne.s32.totalorder %s99, %s100
      %p111 = scmp.eq.s32.totalorder %s30, 0
      %p112 = por %p110, %p111
      %p113 = scmp.ne.s32.totalorder %s99, %s100
      %p114 = scmp.eq.s32.totalorder %s31, 2
      %p115 = por %p113, %p114
      %p117 = scmp.ne.s32.totalorder %s100, %s116
      %p118 = scmp.eq.s32.totalorder %s31, 0
      %p119 = por %p117, %p118
      %p120 = scmp.eq.s32.totalorder %s32, 2
      %s121 = scalar_select %p120, %s33, 0
      %s122 = scalar_select %p120, %s34, 0
      %p123 = scmp.eq.s32.totalorder %s51, 2
      %s124 = scalar_select %p123, %s47, 0
      %s125 = scalar_select %p123, %s43, 0
      %s126 = ssub.s32 %s121, %s124
      %s127 = ssub.s32 %s122, %s125
      %s128 = sor.u32 %s126, %s127
      %p129 = scmp.eq.s32.totalorder %s128, 0
      %s131 = sadd.s32 %s130, 1
      %s132 = scalar_select %p129, %s130, %s131
      %p135 = pneg %p129
      %p136 = scmp.eq.s32.totalorder %s25, 2
      %p137 = por %p135, %p136
      %p138 = scmp.ne.s32.totalorder %s130, %s133
      %p139 = scmp.eq.s32.totalorder %s25, 0
      %p140 = por %p138, %p139
      %p141 = scmp.ne.s32.totalorder %s130, %s133
      %p142 = scmp.eq.s32.totalorder %s30, 2
      %p143 = por %p141, %p142
      %p144 = scmp.ne.s32.totalorder %s133, %s134
      %p145 = scmp.eq.s32.totalorder %s30, 0
      %p146 = por %p144, %p145
      %p147 = scmp.ne.s32.totalorder %s133, %s134
      %p148 = scmp.eq.s32.totalorder %s31, 2
      %p149 = por %p147, %p148
      %p151 = scmp.ne.s32.totalorder %s134, %s150
      %p152 = scmp.eq.s32.totalorder %s31, 0
      %p153 = por %p151, %p152
      %s154 = ssub.s32 %s32, %s51
      %s155 = ssub.s32 %s34, %s43
      %s156 = sor.u32 %s154, %s155
      %p157 = scmp.eq.s32.totalorder %s156, 0
      %s159 = sadd.s32 %s158, 1
      %s160 = scalar_select %p157, %s158, %s159
      %p163 = pneg %p157
      %p164 = scmp.eq.s32.totalorder %s25, 2
      %p165 = por %p163, %p164
      %p166 = scmp.ne.s32.totalorder %s158, %s161
      %p167 = scmp.eq.s32.totalorder %s25, 0
      %p168 = por %p166, %p167
      %p169 = scmp.ne.s32.totalorder %s158, %s161
      %p170 = scmp.eq.s32.totalorder %s30, 2
      %p171 = por %p169, %p170
      %p172 = scmp.ne.s32.totalorder %s161, %s162
      %p173 = scmp.eq.s32.totalorder %s30, 0
      %p174 = por %p172, %p173
      %p175 = scmp.ne.s32.totalorder %s161, %s162
      %p176 = scmp.eq.s32.totalorder %s31, 2
      %p177 = por %p175, %p176
      %p179 = scmp.ne.s32.totalorder %s162, %s178
      %p180 = scmp.eq.s32.totalorder %s31, 0
      %p181 = por %p179, %p180
      %s182 = ssub.s32 %s32, %s51
      %p183 = scmp.eq.s32.totalorder %s182, 0
      %s185 = sadd.s32 %s184, 1
      %s186 = scalar_select %p183, %s184, %s185
      %p189 = pneg %p183
      %p190 = scmp.eq.s32.totalorder %s25, 2
      %p191 = por %p189, %p190
      %p192 = scmp.ne.s32.totalorder %s184, %s187
      %p193 = scmp.eq.s32.totalorder %s25, 0
      %p194 = por %p192, %p193
      %p195 = scmp.ne.s32.totalorder %s184, %s187
      %p196 = scmp.eq.s32.totalorder %s30, 2
      %p197 = por %p195, %p196
      %p198 = scmp.ne.s32.totalorder %s187, %s188
      %p199 = scmp.eq.s32.totalorder %s30, 0
      %p200 = por %p198, %p199
      %p201 = scmp.ne.s32.totalorder %s187, %s188
      %p202 = scmp.eq.s32.totalorder %s31, 2
      %p203 = por %p201, %p202
      %p205 = scmp.ne.s32.totalorder %s188, %s204
      %p206 = scmp.eq.s32.totalorder %s31, 0
      %p207 = por %p205, %p206
      %s208 = ssub.s32 %s32, %s51
      %p209 = scmp.eq.s32.totalorder %s208, 0
      %s211 = sadd.s32 %s210, 1
      %s212 = scalar_select %p209, %s210, %s211
      %p215 = pneg %p209
      %p216 = scmp.eq.s32.totalorder %s25, 2
      %p217 = por %p215, %p216
      %p218 = scmp.ne.s32.totalorder %s210, %s213
      %p219 = scmp.eq.s32.totalorder %s25, 0
      %p220 = por %p218, %p219
      %p221 = scmp.ne.s32.totalorder %s210, %s213
      %p222 = scmp.eq.s32.totalorder %s30, 2
      %p223 = por %p221, %p222
      %p224 = scmp.ne.s32.totalorder %s213, %s214
      %p225 = scmp.eq.s32.totalorder %s30, 0
      %p226 = por %p224, %p225
      %p227 = scmp.ne.s32.totalorder %s213, %s214
      %p228 = scmp.eq.s32.totalorder %s31, 2
      %p229 = por %p227, %p228
      %p231 = scmp.ne.s32.totalorder %s214, %s230
      %p232 = scmp.eq.s32.totalorder %s31, 0
      %p233 = por %p231, %p232
      %s234 = ssub.s32 %s32, %s51
      %p235 = scmp.eq.s32.totalorder %s234, 0
      %s237 = sadd.s32 %s236, 1
      %s238 = scalar_select %p235, %s236, %s237
      %p241 = pneg %p235
      %p242 = scmp.eq.s32.totalorder %s25, 2
      %p243 = por %p241, %p242
      %p244 = scmp.ne.s32.totalorder %s236, %s239
      %p245 = scmp.eq.s32.totalorder %s25, 0
      %p246 = por %p244, %p245
      %p247 = scmp.ne.s32.totalorder %s236, %s239
      %p248 = scmp.eq.s32.totalorder %s30, 2
      %p249 = por %p247, %p248
      %p250 = scmp.ne.s32.totalorder %s239, %s240
      %p251 = scmp.eq.s32.totalorder %s30, 0
      %p252 = por %p250, %p251
      %p253 = scmp.ne.s32.totalorder %s239, %s240
      %p254 = scmp.eq.s32.totalorder %s31, 2
      %p255 = por %p253, %p254
      %p257 = scmp.ne.s32.totalorder %s240, %s256
      %p258 = scmp.eq.s32.totalorder %s31, 0
      %p259 = por %p257, %p258
      %s260 = ssub.s32 %s32, %s51
      %s261 = ssub.s32 %s33, %s47
      %s262 = sor.u32 %s260, %s261
      %p263 = scmp.eq.s32.totalorder %s262, 0
      %s265 = sadd.s32 %s264, 1
      %s266 = scalar_select %p263, %s264, %s265
      %p269 = pneg %p263
      %p270 = scmp.eq.s32.totalorder %s25, 2
      %p271 = por %p269, %p270
      %p272 = scmp.ne.s32.totalorder %s264, %s267
      %p273 = scmp.eq.s32.totalorder %s25, 0
      %p274 = por %p272, %p273
      %p275 = scmp.ne.s32.totalorder %s264, %s267
      %p276 = scmp.eq.s32.totalorder %s30, 2
      %p277 = por %p275, %p276
      %p278 = scmp.ne.s32.totalorder %s267, %s268
      %p279 = scmp.eq.s32.totalorder %s30, 0
      %p280 = por %p278, %p279
      %p281 = scmp.ne.s32.totalorder %s267, %s268
      %p282 = scmp.eq.s32.totalorder %s31, 2
      %p283 = por %p281, %p282
      %p285 = scmp.ne.s32.totalorder %s268, %s284
      %p286 = scmp.eq.s32.totalorder %s31, 0
      %p287 = por %p285, %p286
      %p288 = scmp.le.s32.totalorder 1, %s25
      %p289 = scmp.lt.s32.totalorder %s25, 4
      %p290 = pnand %p288, %p289
      %p291 = pneg %p290
      // Predicated region
      $region9: #{tpu_custom_call.1} parent=5 // pred_check
        _
      $region10: #{tpu_custom_call.1} parent=5 // pred_check_branch
        %293 = sbr.rel (%p290) target = $region12
      $region11: #{tpu_custom_call.1} parent=5 // pred_region
        %s294 = ssub.s32 %s25, 1
        // Predicated region
        $region13: #{tpu_custom_call.1} parent=11 // pred_check
          %p295 = pneg %p226
        $region14: #{tpu_custom_call.1} parent=11 // pred_check_branch
          %297 = sbr.rel (%p295) target = $region16
        $region15: #{tpu_custom_call.1} parent=11 // pred_region
          %s299 = ssub.s32 2048, 2048
          %300 = vsyncadd [#allocation10], %s299
          %s301 = smul.addr %s35, 32
          %s302 = smul.addr %s301, 64
          %s303 = scalar_lea.hbm %s5, %s302
          %s304 = sshll.u32 [#allocation11], 4
          %s305 = int_to_ptr.vmem [resolvable:$true] %s304
          %310 = dma.hbm_to_vmem [thread:$0]  %s303, 2048, %s305, [#allocation10], 128, 128, 8
        $region16: #{tpu_custom_call.1} parent=11 // pred_fallthru
          _
      $region12: #{tpu_custom_call.1} parent=5 // pred_fallthru
        _
      %p311 = scmp.lt.s32.totalorder %s25, 3
      // Predicated region
      $region17: #{tpu_custom_call.1} parent=5 // pred_check
        %p312 = pneg %p311
      $region18: #{tpu_custom_call.1} parent=5 // pred_check_branch
        %314 = sbr.rel (%p312) target = $region20
      $region19: #{tpu_custom_call.1} parent=5 // pred_region
        // Predicated region
        $region21: #{tpu_custom_call.1} parent=19 // pred_check
          %p315 = pneg %p72
        $region22: #{tpu_custom_call.1} parent=19 // pred_check_branch
          %317 = sbr.rel (%p315) target = $region24
        $region23: #{tpu_custom_call.1} parent=19 // pred_region
          %s318 = sand.u32 %s62, 1
          %s319 = scalar_lea.sflag [#allocation4], %s318
          %s320 = sand.u32 %s62, 1
          %s321 = smul.addr %s320, 16
          %s322 = scalar_lea.vmem [#allocation3], %s321
          %p323 = scmp.eq.s32.totalorder %s32, 0
          %s324 = scalar_select %p323, %s33, 0
          %s325 = scalar_select %p323, %s34, 0
          %s326 = smul.u32 2, %s324
          %s328 = ssub.s32 256, 256
          %329 = vsyncadd %s319, %s328
          %s330 = sadd.s32 %s325, %s326
          %s331 = smul.addr %s330, 128
          %s332 = scalar_lea.hbm %s0, %s331
          %s333 = sshll.u32 %s322, 4
          %s334 = int_to_ptr.vmem [resolvable:$true] %s333
          %339 = dma.hbm_to_vmem [thread:$0]  %s332, 256, %s334, %s319, 128, 128, 8
        $region24: #{tpu_custom_call.1} parent=19 // pred_fallthru
          _
        // Predicated region
        $region25: #{tpu_custom_call.1} parent=19 // pred_check
          %p340 = pneg %p106
        $region26: #{tpu_custom_call.1} parent=19 // pred_check_branch
          %342 = sbr.rel (%p340) target = $region28
        $region27: #{tpu_custom_call.1} parent=19 // pred_region
          %s343 = sand.u32 %s25, 1
          %s344 = scalar_lea.sflag [#allocation7], %s343
          %s345 = sand.u32 %s96, 1
          %s346 = smul.addr %s345, 16
          %s347 = scalar_lea.vmem [#allocation6], %s346
          %p348 = scmp.eq.s32.totalorder %s32, 1
          %s349 = scalar_select %p348, %s33, 0
          %s350 = scalar_select %p348, %s34, 0
          %s351 = smul.u32 2, %s349
          %s353 = ssub.s32 256, 256
          %354 = vsyncadd %s344, %s353
          %s355 = sadd.s32 %s350, %s351
          %s356 = smul.addr %s355, 128
          %s357 = scalar_lea.hbm %s1, %s356
          %s358 = sshll.u32 %s347, 4
          %s359 = int_to_ptr.vmem [resolvable:$true] %s358
          %364 = dma.hbm_to_vmem [thread:$0]  %s357, 256, %s359, %s344, 128, 128, 8
        $region28: #{tpu_custom_call.1} parent=19 // pred_fallthru
          _
        // Predicated region
        $region29: #{tpu_custom_call.1} parent=19 // pred_check
          %p365 = pneg %p140
        $region30: #{tpu_custom_call.1} parent=19 // pred_check_branch
          %367 = sbr.rel (%p365) target = $region32
        $region31: #{tpu_custom_call.1} parent=19 // pred_region
          %s368 = sand.u32 %s25, 1
          %s369 = scalar_lea.sflag [#allocation7], %s368
          %s370 = sand.u32 %s130, 1
          %s371 = smul.addr %s370, 16
          %s372 = scalar_lea.vmem [#allocation8], %s371
          %p373 = scmp.eq.s32.totalorder %s32, 2
          %s374 = scalar_select %p373, %s33, 0
          %s375 = scalar_select %p373, %s34, 0
          %s376 = smul.u32 2, %s374
          %s378 = ssub.s32 256, 256
          %379 = vsyncadd %s369, %s378
          %s380 = sadd.s32 %s375, %s376
          %s381 = smul.addr %s380, 128
          %s382 = scalar_lea.hbm %s2, %s381
          %s383 = sshll.u32 %s372, 4
          %s384 = int_to_ptr.vmem [resolvable:$true] %s383
          %389 = dma.hbm_to_vmem [thread:$0]  %s382, 256, %s384, %s369, 128, 128, 8
        $region32: #{tpu_custom_call.1} parent=19 // pred_fallthru
          _
        // Predicated region
        $region33: #{tpu_custom_call.1} parent=19 // pred_check
          %p390 = pneg %p168
        $region34: #{tpu_custom_call.1} parent=19 // pred_check_branch
          %392 = sbr.rel (%p390) target = $region36
        $region35: #{tpu_custom_call.1} parent=19 // pred_region
          %s393 = sand.u32 %s25, 1
          %s394 = scalar_lea.sflag [#allocation10], %s393
          %s395 = sand.u32 %s158, 1
          %s396 = smul.addr %s395, 64
          %s397 = scalar_lea.vmem [#allocation9], %s396
          %s398 = smul.u32 16, %s34
          %s400 = ssub.s32 1024, 1024
          %401 = vsyncadd %s394, %s400
          %s402 = smul.addr %s32, 16
          %s403 = sadd.s32 %s398, %s402
          %s404 = smul.addr %s403, 64
          %s405 = scalar_lea.hbm %s3, %s404
          %s406 = sshll.u32 %s397, 4
          %s407 = int_to_ptr.vmem [resolvable:$true] %s406
          %412 = dma.hbm_to_vmem [thread:$0]  %s405, 1024, %s407, %s394, 64, 64, 4
        $region36: #{tpu_custom_call.1} parent=19 // pred_fallthru
          _
        // Predicated region
        $region37: #{tpu_custom_call.1} parent=19 // pred_check
          %p413 = pneg %p194
        $region38: #{tpu_custom_call.1} parent=19 // pred_check_branch
          %415 = sbr.rel (%p413) target = $region40
        $region39: #{tpu_custom_call.1} parent=19 // pred_region
          %p416 = scmp.lt.s32.totalorder %s32, 2
          %s417 = scalar_select %p416, %s32, 2
          %s418 = scalar_lea.vmem %s4, %s417
        $region40: #{tpu_custom_call.1} parent=19 // pred_fallthru
          _
        // Predicated region
        $region41: #{tpu_custom_call.1} parent=19 // pred_check
          %p419 = pneg %p246
        $region42: #{tpu_custom_call.1} parent=19 // pred_check_branch
          %421 = sbr.rel (%p419) target = $region44
        $region43: #{tpu_custom_call.1} parent=19 // pred_region
          %p422 = scmp.lt.s32.totalorder %s32, 2
          %s423 = scalar_select %p422, %s32, 2
          %s424 = smul.addr %s423, 2
          %s425 = scalar_lea.vmem %s6, %s424
        $region44: #{tpu_custom_call.1} parent=19 // pred_fallthru
          _
      $region20: #{tpu_custom_call.1} parent=5 // pred_fallthru
        _
      %p426 = scmp.le.s32.totalorder 1, %s25
      %p427 = scmp.lt.s32.totalorder %s25, 4
      %p428 = pnand %p426, %p427
      %p429 = pneg %p428
      // Predicated region
      $region45: #{tpu_custom_call.1} parent=5 // pred_check
        _
      $region46: #{tpu_custom_call.1} parent=5 // pred_check_branch
        %431 = sbr.rel (%p428) target = $region48
      $region47: #{tpu_custom_call.1} parent=5 // pred_region
        %s432 = ssub.s32 %s25, 1
        %s433 = sand.u32 %s65, 1
        %s434 = scalar_lea.sflag [#allocation4], %s433
        %s435 = sand.u32 %s65, 1
        %s436 = smul.addr %s435, 16
        %s437 = scalar_lea.vmem [#allocation3], %s436
        // Predicated region
        $region49: #{tpu_custom_call.1} parent=47 // pred_check
          %p438 = pneg %p78
        $region50: #{tpu_custom_call.1} parent=47 // pred_check_branch
          %440 = sbr.rel (%p438) target = $region52
        $region51: #{tpu_custom_call.1} parent=47 // pred_region
          %441 = dma.done %s434, 256
        $region52: #{tpu_custom_call.1} parent=47 // pred_fallthru
          _
        %s442 = sand.u32 %s30, 1
        %s443 = scalar_lea.sflag [#allocation7], %s442
        %s444 = sand.u32 %s99, 1
        %s445 = smul.addr %s444, 16
        %s446 = scalar_lea.vmem [#allocation6], %s445
        // Predicated region
        $region53: #{tpu_custom_call.1} parent=47 // pred_check
          %p447 = pneg %p112
        $region54: #{tpu_custom_call.1} parent=47 // pred_check_branch
          %449 = sbr.rel (%p447) target = $region56
        $region55: #{tpu_custom_call.1} parent=47 // pred_region
          %450 = dma.done %s443, 256
        $region56: #{tpu_custom_call.1} parent=47 // pred_fallthru
          _
        %s451 = sand.u32 %s30, 1
        %s452 = scalar_lea.sflag [#allocation7], %s451
        %s453 = sand.u32 %s133, 1
        %s454 = smul.addr %s453, 16
        %s455 = scalar_lea.vmem [#allocation8], %s454
        // Predicated region
        $region57: #{tpu_custom_call.1} parent=47 // pred_check
          %p456 = pneg %p146
        $region58: #{tpu_custom_call.1} parent=47 // pred_check_branch
          %458 = sbr.rel (%p456) target = $region60
        $region59: #{tpu_custom_call.1} parent=47 // pred_region
          %459 = dma.done %s452, 256
        $region60: #{tpu_custom_call.1} parent=47 // pred_fallthru
          _
        %s460 = sand.u32 %s30, 1
        %s461 = scalar_lea.sflag [#allocation10], %s460
        %s462 = sand.u32 %s161, 1
        %s463 = smul.addr %s462, 64
        %s464 = scalar_lea.vmem [#allocation9], %s463
        // Predicated region
        $region61: #{tpu_custom_call.1} parent=47 // pred_check
          %p465 = pneg %p174
        $region62: #{tpu_custom_call.1} parent=47 // pred_check_branch
          %467 = sbr.rel (%p465) target = $region64
        $region63: #{tpu_custom_call.1} parent=47 // pred_region
          %468 = dma.done %s461, 1024
        $region64: #{tpu_custom_call.1} parent=47 // pred_fallthru
          _
        // Predicated region
        $region65: #{tpu_custom_call.1} parent=47 // pred_check
          %p469 = pneg %p226
        $region66: #{tpu_custom_call.1} parent=47 // pred_check_branch
          %471 = sbr.rel (%p469) target = $region68
        $region67: #{tpu_custom_call.1} parent=47 // pred_region
          %472 = dma.done [#allocation10], 2048
        $region68: #{tpu_custom_call.1} parent=47 // pred_fallthru
          _
        %s473 = sand.u32 %s65, 1
        %s474 = scalar_lea.sflag [#allocation4], %s473
        %s475 = sand.u32 %s65, 1
        %s476 = smul.addr %s475, 16
        %s477 = scalar_lea.vmem [#allocation3], %s476
        %p478 = pneg %p78
        %p479 = pneg %p75
        %s480 = sand.u32 %s30, 1
        %s481 = scalar_lea.sflag [#allocation7], %s480
        %s482 = sand.u32 %s99, 1
        %s483 = smul.addr %s482, 16
        %s484 = scalar_lea.vmem [#allocation6], %s483
        %p485 = pneg %p112
        %p486 = pneg %p109
        %s487 = sand.u32 %s30, 1
        %s488 = scalar_lea.sflag [#allocation7], %s487
        %s489 = sand.u32 %s133, 1
        %s490 = smul.addr %s489, 16
        %s491 = scalar_lea.vmem [#allocation8], %s490
        %p492 = pneg %p146
        %p493 = pneg %p143
        %s494 = sand.u32 %s30, 1
        %s495 = scalar_lea.sflag [#allocation10], %s494
        %s496 = sand.u32 %s161, 1
        %s497 = smul.addr %s496, 64
        %s498 = scalar_lea.vmem [#allocation9], %s497
        %p499 = pneg %p174
        %p500 = pneg %p171
        %p501 = scmp.lt.s32.totalorder %s35, 2
        %s502 = scalar_select %p501, %s35, 2
        %s503 = scalar_lea.vmem %s4, %s502
        %p504 = pneg %p200
        %p505 = pneg %p197
        %p506 = pneg %p226
        %p507 = pneg %p223
        %p508 = scmp.lt.s32.totalorder %s35, 2
        %s509 = scalar_select %p508, %s35, 2
        %s510 = smul.addr %s509, 2
        %s511 = scalar_lea.vmem %s6, %s510
        %p512 = pneg %p252
        %p513 = pneg %p249
        %p514 = pneg %p280
        %p515 = pneg %p277
        %s516 = sand.u32 %s267, 1
        %s517 = scalar_lea.sflag [#allocation5], %s516
        %s518 = sand.u32 %s267, 1
        %s519 = smul.addr %s518, 32
        %s520 = scalar_lea.vmem [#allocation12], %s519
        %p521 = scmp.eq.s32.totalorder %s35, 0
        %s522 = scalar_select %p521, %s36, 0
        %s523 = scalar_select %p521, %s37, 0
        %s524 = smul.u32 2, %s522
        %p525 = scmp.eq.s32.totalorder %s35, 1
        %s526 = scalar_select %p525, %s36, 0
        %s527 = scalar_select %p525, %s37, 0
        %s528 = smul.u32 2, %s526
        %p529 = scmp.eq.s32.totalorder %s35, 2
        %s530 = scalar_select %p529, %s36, 0
        %s531 = scalar_select %p529, %s37, 0
        %s532 = smul.u32 2, %s530
        %s533 = smul.u32 16, %s37
        %p534 = scmp.lt.s32.totalorder %s35, 2
        %s535 = scalar_select %p534, %s35, 2
        %s536 = scalar_lea.vmem %s4, %s535
        %p537 = scmp.lt.s32.totalorder %s35, 2
        %s538 = scalar_select %p537, %s35, 2
        %s539 = smul.addr %s538, 2
        %s540 = scalar_lea.vmem %s6, %s539
        %s541 = smul.u32 2, %s36
        %p543 = scmp.eq.s32.totalorder %s37, 0
        // Predicated region
        $region69: #{tpu_custom_call.1} parent=47 // pred_check
          %p544 = pneg %p543
        $region70: #{tpu_custom_call.1} parent=47 // pred_check_branch
          %546 = sbr.rel (%p544) target = $region72
        $region71: #{tpu_custom_call.1} parent=47 // pred_region
          %v547 = vld [vmem:[%s536] sm:$0x1]
          %v549 = vlaneseq
          %v550 = vshrl.u32 %v549, 7
          %v551 = vsub.s32 0, %v550
          %v552 = vrot.slane %v547, %v551
          %554 = vst [vmem:[#allocation2] sm:$0xff] %v552
          %555 = vst [vmem:[#allocation2 + $0x8] sm:$0xff] %v552
        $region72: #{tpu_custom_call.1} parent=47 // pred_fallthru
          _
        %p556 = scmp.eq.s32.totalorder %s35, 0
        %v557 = vld [vmem:[%s437] sm:$0xff]
        %v558 = vld [vmem:[%s437 + $0x8] sm:$0xff]
        %p559 = scmp.eq.s32.totalorder %s35, 1
        %v560 = vld [vmem:[%s446] sm:$0xff]
        %v561 = vld [vmem:[%s446 + $0x8] sm:$0xff]
        %v562 = vld [vmem:[%s455] sm:$0xff]
        %v563 = vld [vmem:[%s455 + $0x8] sm:$0xff]
        %s564 = scalar_select %p559, 1, 0
        %v565 = vstv %s564
        %vm566 = vcmp.eq.s32.totalorder %v565, 1
        %v567 = vsel %vm566, %v560, %v562
        %v568 = vsel %vm566, %v561, %v563
        %s569 = scalar_select %p556, 1, 0
        %v570 = vstv %s569
        %vm571 = vcmp.eq.s32.totalorder %v570, 1
        %v572 = vsel %vm571, %v557, %v567
        %v573 = vsel %vm571, %v558, %v568
        %v574 = vld [vmem:[#allocation2] sm:$0xff]
        %v575 = vld [vmem:[#allocation2 + $0x8] sm:$0xff]
        %v576 = vpack.c.bf16 %v573, %v572
        %v577 = vld [vmem:[%s464] sm:$0xf]
        %v578 = vld [vmem:[%s464 + $0x4] sm:$0xf]
        %v579 = vld [vmem:[%s464 + $0x8] sm:$0xf]
        %v580 = vld [vmem:[%s464 + $0xc] sm:$0xf]
        %v581 = vld [vmem:[%s464 + $0x10] sm:$0xf]
        %v582 = vld [vmem:[%s464 + $0x14] sm:$0xf]
        %v583 = vld [vmem:[%s464 + $0x18] sm:$0xf]
        %v584 = vld [vmem:[%s464 + $0x1c] sm:$0xf]
        %v585 = vld [vmem:[%s464 + $0x20] sm:$0xf]
        %v586 = vld [vmem:[%s464 + $0x24] sm:$0xf]
        %v587 = vld [vmem:[%s464 + $0x28] sm:$0xf]
        %v588 = vld [vmem:[%s464 + $0x2c] sm:$0xf]
        %v589 = vld [vmem:[%s464 + $0x30] sm:$0xf]
        %v590 = vld [vmem:[%s464 + $0x34] sm:$0xf]
        %v591 = vld [vmem:[%s464 + $0x38] sm:$0xf]
        %v592 = vld [vmem:[%s464 + $0x3c] sm:$0xf]
        %v609 = vunpack.c.l.b16 %v577
        %v610 = vunpack.c.l.b16 %v578
        %v611 = vunpack.c.l.b16 %v579
        %v612 = vunpack.c.l.b16 %v580
        %v613 = vunpack.c.l.b16 %v581
        %v614 = vunpack.c.l.b16 %v582
        %v615 = vunpack.c.l.b16 %v583
        %v616 = vunpack.c.l.b16 %v584
        %v617 = vunpack.c.l.b16 %v585
        %v618 = vunpack.c.l.b16 %v586
        %v619 = vunpack.c.l.b16 %v587
        %v620 = vunpack.c.l.b16 %v588
        %v621 = vunpack.c.l.b16 %v589
        %v622 = vunpack.c.l.b16 %v590
        %v623 = vunpack.c.l.b16 %v591
        %v624 = vunpack.c.l.b16 %v592
        %v625 = vpack.c.b16 %v610, %v609
        %v626 = vpack.c.b16 %v612, %v611
        %v627 = vpack.c.b16 %v614, %v613
        %v628 = vpack.c.b16 %v616, %v615
        %v629 = vpack.c.b16 %v618, %v617
        %v630 = vpack.c.b16 %v620, %v619
        %v631 = vpack.c.b16 %v622, %v621
        %v632 = vpack.c.b16 %v624, %v623
        %641 = vmatprep.subr.bf16.mxu0 0
        %642 = vmatpush1.bf16.msra.mxu0 %v625
        %643 = vmatprep.subr.bf16.mxu0 0
        %644 = vmatpush1.bf16.msra.mxu0 %v626
        %645 = vmatprep.subr.bf16.mxu0 0
        %646 = vmatpush1.bf16.msra.mxu0 %v627
        %647 = vmatprep.subr.bf16.mxu0 0
        %648 = vmatpush1.bf16.msra.mxu0 %v628
        %649 = vmatprep.subr.bf16.mxu0 0
        %650 = vmatpush1.bf16.msra.mxu0 %v629
        %651 = vmatprep.subr.bf16.mxu0 0
        %652 = vmatpush1.bf16.msra.mxu0 %v630
        %653 = vmatprep.subr.bf16.mxu0 0
        %654 = vmatpush1.bf16.msra.mxu0 %v631
        %655 = vmatprep.subr.bf16.mxu0 0
        %656 = vmatpush1.bf16.msra.mxu0 %v632
        %657 = vmatprep.subr.bf16.mxu0 0
        %658 = vmatpush1.bf16.msra.mxu0 0
        %659 = vmatprep.subr.bf16.mxu0 0
        %660 = vmatpush1.bf16.msra.mxu0 0
        %661 = vmatprep.subr.bf16.mxu0 0
        %662 = vmatpush1.bf16.msra.mxu0 0
        %663 = vmatprep.subr.bf16.mxu0 0
        %664 = vmatpush1.bf16.msra.mxu0 0
        %665 = vmatprep.subr.bf16.mxu0 0
        %666 = vmatpush1.bf16.msra.mxu0 0
        %667 = vmatprep.subr.bf16.mxu0 0
        %668 = vmatpush1.bf16.msra.mxu0 0
        %669 = vmatprep.subr.bf16.mxu0 0
        %670 = vmatpush1.bf16.msra.mxu0 0
        %671 = vmatprep.subr.bf16.mxu0 0
        %672 = vmatpush1.bf16.msra.mxu0 0
        %673 = vmatprep.mubr.bf16.mxu0 0
        %674 = vmatmul.mubr.bf16.gmra.mrb[0].mxu0 %v576
        %v675 = vpop.f32.mrb[0].mxu0
        %v676 = vadd.f32 0.0, %v675
        %v677 = vpop.f32.mrb[0].mxu0
        %v678 = vpop.f32.mrb[0].mxu0
        %v679 = vadd.f32 0.0, %v678
        %v680 = vpop.f32.mrb[0].mxu0
        %681 = vdwg.mxu0
        %v682 = vadd.f32 %v574, %v676
        %v683 = vadd.f32 %v575, %v679
        %684 = vst [vmem:[#allocation2] sm:$0xff] %v682
        %685 = vst [vmem:[#allocation2 + $0x8] sm:$0xff] %v683
        // Predicated region
        $region73: #{tpu_custom_call.1} parent=47 // pred_check
          %p686 = pneg %p543
        $region74: #{tpu_custom_call.1} parent=47 // pred_check_branch
          %688 = sbr.rel (%p686) target = $region76
        $region75: #{tpu_custom_call.1} parent=47 // pred_region
          %v689 = vld [vmem:[#allocation2] sm:$0xff]
          %v690 = vld [vmem:[#allocation2 + $0x8] sm:$0xff]
          %v691 = vmax.f32 %v689, 0.0
          %v692 = vmax.f32 %v690, 0.0
          %v693 = vpack.c.bf16 %v692, %v691
          %v694 = vld [vmem:[#allocation11] sm:$0xff]
          %v695 = vld [vmem:[#allocation11 + $0x8] sm:$0xff]
          %v696 = vld [vmem:[#allocation11 + $0x10] sm:$0xff]
          %v697 = vld [vmem:[#allocation11 + $0x18] sm:$0xff]
          %v698 = vld [vmem:[#allocation11 + $0x20] sm:$0xff]
          %v699 = vld [vmem:[#allocation11 + $0x28] sm:$0xff]
          %v700 = vld [vmem:[#allocation11 + $0x30] sm:$0xff]
          %v701 = vld [vmem:[#allocation11 + $0x38] sm:$0xff]
          %v702 = vld [vmem:[#allocation11 + $0x40] sm:$0xff]
          %v703 = vld [vmem:[#allocation11 + $0x48] sm:$0xff]
          %v704 = vld [vmem:[#allocation11 + $0x50] sm:$0xff]
          %v705 = vld [vmem:[#allocation11 + $0x58] sm:$0xff]
          %v706 = vld [vmem:[#allocation11 + $0x60] sm:$0xff]
          %v707 = vld [vmem:[#allocation11 + $0x68] sm:$0xff]
          %v708 = vld [vmem:[#allocation11 + $0x70] sm:$0xff]
          %v709 = vld [vmem:[#allocation11 + $0x78] sm:$0xff]
          %v710 = vld [vmem:[%s540] sm:$0x3]
          %v712 = vlaneseq
          %v713 = vshrl.u32 %v712, 7
          %v714 = vsub.s32 0, %v713
          %v715 = vrot.slane %v710, %v714
          %v716 = vlaneseq
          %v717 = vshrl.u32 %v716, 7
          %v718 = vsub.s32 1, %v717
          %v719 = vrot.slane %v710, %v718
          %v738 = vunpack.c.l.b16 %v694
          %v739 = vunpack.c.h.b16 %v694
          %v740 = vunpack.c.l.b16 %v695
          %v741 = vunpack.c.h.b16 %v695
          %v742 = vunpack.c.l.b16 %v696
          %v743 = vunpack.c.h.b16 %v696
          %v744 = vunpack.c.l.b16 %v697
          %v745 = vunpack.c.h.b16 %v697
          %v746 = vunpack.c.l.b16 %v698
          %v747 = vunpack.c.h.b16 %v698
          %v748 = vunpack.c.l.b16 %v699
          %v749 = vunpack.c.h.b16 %v699
          %v750 = vunpack.c.l.b16 %v700
          %v751 = vunpack.c.h.b16 %v700
          %v752 = vunpack.c.l.b16 %v701
          %v753 = vunpack.c.h.b16 %v701
          %v754 = vunpack.c.l.b16 %v702
          %v755 = vunpack.c.h.b16 %v702
          %v756 = vunpack.c.l.b16 %v703
          %v757 = vunpack.c.h.b16 %v703
          %v758 = vunpack.c.l.b16 %v704
          %v759 = vunpack.c.h.b16 %v704
          %v760 = vunpack.c.l.b16 %v705
          %v761 = vunpack.c.h.b16 %v705
          %v762 = vunpack.c.l.b16 %v706
          %v763 = vunpack.c.h.b16 %v706
          %v764 = vunpack.c.l.b16 %v707
          %v765 = vunpack.c.h.b16 %v707
          %v766 = vunpack.c.l.b16 %v708
          %v767 = vunpack.c.h.b16 %v708
          %v768 = vunpack.c.l.b16 %v709
          %v769 = vunpack.c.h.b16 %v709
          %v770 = vpack.c.b16 %v740, %v738
          %v771 = vpack.c.b16 %v741, %v739
          %v772 = vpack.c.b16 %v744, %v742
          %v773 = vpack.c.b16 %v745, %v743
          %v774 = vpack.c.b16 %v748, %v746
          %v775 = vpack.c.b16 %v749, %v747
          %v776 = vpack.c.b16 %v752, %v750
          %v777 = vpack.c.b16 %v753, %v751
          %v778 = vpack.c.b16 %v756, %v754
          %v779 = vpack.c.b16 %v757, %v755
          %v780 = vpack.c.b16 %v760, %v758
          %v781 = vpack.c.b16 %v761, %v759
          %v782 = vpack.c.b16 %v764, %v762
          %v783 = vpack.c.b16 %v765, %v763
          %v784 = vpack.c.b16 %v768, %v766
          %v785 = vpack.c.b16 %v769, %v767
          %802 = vmatprep.subr.bf16.mxu0 %v771
          %803 = vmatpush1.bf16.msra.mxu0 %v770
          %804 = vmatprep.subr.bf16.mxu0 %v773
          %805 = vmatpush1.bf16.msra.mxu0 %v772
          %806 = vmatprep.subr.bf16.mxu0 %v775
          %807 = vmatpush1.bf16.msra.mxu0 %v774
          %808 = vmatprep.subr.bf16.mxu0 %v777
          %809 = vmatpush1.bf16.msra.mxu0 %v776
          %810 = vmatprep.subr.bf16.mxu0 %v779
          %811 = vmatpush1.bf16.msra.mxu0 %v778
          %812 = vmatprep.subr.bf16.mxu0 %v781
          %813 = vmatpush1.bf16.msra.mxu0 %v780
          %814 = vmatprep.subr.bf16.mxu0 %v783
          %815 = vmatpush1.bf16.msra.mxu0 %v782
          %816 = vmatprep.subr.bf16.mxu0 %v785
          %817 = vmatpush1.bf16.msra.mxu0 %v784
          %818 = vmatprep.subr.bf16.mxu0 0
          %819 = vmatpush1.bf16.msra.mxu0 0
          %820 = vmatprep.subr.bf16.mxu0 0
          %821 = vmatpush1.bf16.msra.mxu0 0
          %822 = vmatprep.subr.bf16.mxu0 0
          %823 = vmatpush1.bf16.msra.mxu0 0
          %824 = vmatprep.subr.bf16.mxu0 0
          %825 = vmatpush1.bf16.msra.mxu0 0
          %826 = vmatprep.subr.bf16.mxu0 0
          %827 = vmatpush1.bf16.msra.mxu0 0
          %828 = vmatprep.subr.bf16.mxu0 0
          %829 = vmatpush1.bf16.msra.mxu0 0
          %830 = vmatprep.subr.bf16.mxu0 0
          %831 = vmatpush1.bf16.msra.mxu0 0
          %832 = vmatprep.subr.bf16.mxu0 0
          %833 = vmatpush1.bf16.msra.mxu0 0
          %834 = vmatprep.mubr.bf16.mxu0 0
          %835 = vmatmul.mubr.bf16.gmra.mrb[0].mxu0 %v693
          %v836 = vpop.f32.mrb[0].mxu0
          %v837 = vadd.f32 %v715, %v836
          %v838 = vpop.f32.mrb[0].mxu0
          %v839 = vadd.f32 %v719, %v838
          %v840 = vpop.f32.mrb[0].mxu0
          %v841 = vadd.f32 %v715, %v840
          %v842 = vpop.f32.mrb[0].mxu0
          %v843 = vadd.f32 %v719, %v842
          %844 = vdwg.mxu0
          %v845 = vmul.f32 %v837, %v837
          %v846 = vmul.f32 %v839, %v839
          %v847 = vmul.f32 %v841, %v841
          %v848 = vmul.f32 %v843, %v843
          %v849 = vadd.f32 %v845, %v846
          %850 = vadd.xlane.f32.xlu0 %v849
          %v851 = vpop.xlane.xlu0 %850
          %v852 = vadd.f32 %v847, %v848
          %853 = vadd.xlane.f32.xlu0 %v852
          %v854 = vpop.xlane.xlu0 %853
          %v855 = vmax.f32 %v851, 1e-24
          %v856 = vmax.f32 %v854, 1e-24
          %v857 = vrsqrt.pop %v855
          %v858 = vrsqrt.pop %v856
          %v859 = vmul.f32 %v837, %v857
          %v860 = vmul.f32 %v839, %v857
          %v861 = vmul.f32 %v841, %v858
          %v862 = vmul.f32 %v843, %v858
          %863 = vst [vmem:[%s520] sm:$0xff] %v859
          %864 = vst [vmem:[%s520 + $0x8] sm:$0xff] %v860
          %865 = vst [vmem:[%s520 + $0x10] sm:$0xff] %v861
          %866 = vst [vmem:[%s520 + $0x18] sm:$0xff] %v862
        $region76: #{tpu_custom_call.1} parent=47 // pred_fallthru
          _
        %s867 = sand.u32 %s267, 1
        %s868 = scalar_lea.sflag [#allocation5], %s867
        %s869 = sand.u32 %s267, 1
        %s870 = smul.addr %s869, 32
        %s871 = scalar_lea.vmem [#allocation12], %s870
        // Predicated region
        $region77: #{tpu_custom_call.1} parent=47 // pred_check
          %p872 = pneg %p277
        $region78: #{tpu_custom_call.1} parent=47 // pred_check_branch
          %874 = sbr.rel (%p872) target = $region80
        $region79: #{tpu_custom_call.1} parent=47 // pred_region
          %s875 = smul.u32 2, %s36
          %s877 = ssub.s32 512, 512
          %878 = vsyncadd %s868, %s877
          %s879 = smul.addr %s875, 2
          %s880 = smul.addr %s35, 4
          %s881 = sadd.s32 %s879, %s880
          %s882 = smul.addr %s881, 128
          %s883 = scalar_lea.hbm %s7, %s882
          %s884 = sshll.u32 %s871, 4
          %s885 = int_to_ptr.vmem [resolvable:$true] %s884
          %890 = dma.vmem_to_hbm [thread:$0]  %s885, 512, %s883, %s868, 256, 256, 16
        $region80: #{tpu_custom_call.1} parent=47 // pred_fallthru
          _
      $region48: #{tpu_custom_call.1} parent=5 // pred_fallthru
        _
      %p891 = scmp.le.s32.totalorder 2, %s25
      // Predicated region
      $region81: #{tpu_custom_call.1} parent=5 // pred_check
        %p892 = pneg %p891
      $region82: #{tpu_custom_call.1} parent=5 // pred_check_branch
        %894 = sbr.rel (%p892) target = $region84
      $region83: #{tpu_custom_call.1} parent=5 // pred_region
        %s895 = ssub.s32 %s25, 2
        // Predicated region
        $region85: #{tpu_custom_call.1} parent=83 // pred_check
          %p896 = pneg %p283
        $region86: #{tpu_custom_call.1} parent=83 // pred_check_branch
          %898 = sbr.rel (%p896) target = $region88
        $region87: #{tpu_custom_call.1} parent=83 // pred_region
          %s899 = sand.u32 %s268, 1
          %s900 = scalar_lea.sflag [#allocation5], %s899
          %s901 = sand.u32 %s268, 1
          %s902 = smul.addr %s901, 32
          %s903 = scalar_lea.vmem [#allocation12], %s902
          %904 = dma.done %s900, 512
        $region88: #{tpu_custom_call.1} parent=83 // pred_fallthru
          _
      $region84: #{tpu_custom_call.1} parent=5 // pred_fallthru
        _
    $region6: #{tpu_custom_call.1} parent=1 // loop_footer
      %s29 = sadd.s32 1, %s25
    $region7: #{tpu_custom_call.1} parent=1 // loop_footer_branch
      %24 = sbr.rel target = $region3
    $region8: #{tpu_custom_call.1} parent=1 // loop_exit
      _
    %905 = vsyncpa [#allocation4], 1
    %s906 = scalar_lea.sflag [#allocation4], 1
    %907 = vsyncpa %s906, 1
    %908 = vsyncpa [#allocation7], 1
    %s909 = scalar_lea.sflag [#allocation7], 1
    %910 = vsyncpa %s909, 1
    %911 = vsyncpa [#allocation10], 1
    %s912 = scalar_lea.sflag [#allocation10], 1
    %913 = vsyncpa %s912, 1
    %914 = vsyncpa [#allocation5], 1
    %s915 = scalar_lea.sflag [#allocation5], 1
    %916 = vsyncpa %s915, 1

// kernel: tpu_custom_call.1
$region0: #{tpu_custom_call.1}
  #allocation0 [shape = 'u32[]', space=smem, size = 0x4, offset = 0x4, fixed_abs, tag = 'smem constant byte address 0x4 - core index']
  #allocation1 [shape = 'u32[144,128]{1,0:T(1,128)}', space=vmem, size = 0x12000, scoped, tag = 'internal scratch']
  #allocation2 [shape = 'f32[16,128]{1,0:T(8,128)}', space=vmem, size = 0x2000, scoped, tag = 'scratch operand']
  %s0 = inlined_call_operand.hbm [shape: f32[16,128], index: 0, kind: input, shape index: {}]
  %s1 = inlined_call_operand.hbm [shape: f32[16,128], index: 1, kind: input, shape index: {}]
  %s2 = inlined_call_operand.hbm [shape: f32[16,128], index: 2, kind: input, shape index: {}]
  %s3 = inlined_call_operand.hbm [shape: bf16[3,128,128], index: 3, kind: input, shape index: {}]
  %s4 = inlined_call_operand.vmem [shape: f32[3,1,128], index: 4, kind: input, shape index: {}]
  %s5 = inlined_call_operand.hbm [shape: bf16[3,128,256], index: 5, kind: input, shape index: {}]
  %s6 = inlined_call_operand.vmem [shape: f32[3,1,256], index: 6, kind: input, shape index: {}]
  %s7 = inlined_call_operand.hbm [shape: f32[3,16,256], index: 7, kind: output, shape index: {}]
  %s8 = sld [smem:[#allocation0]]
  $region89: #{tpu_custom_call.1} parent=0
    _
  %s10 = ssub.s32 1, %s8
  %s11 = scalar_select 0, %s10, %s8
  $region1: #{tpu_custom_call.1} parent=0
    #allocation3 [shape = 'u8[16384]{0}', space=vmem, size = 0x4000, scoped, tag = 'input window, operand 0']
    #allocation4 [shape = 's32[2]{0}', space=sflag, size = 0x8, scoped, tag = 'scoped memory for tpu_custom_call.1']
    #allocation5 [shape = 's32[2]{0}', space=sflag, size = 0x8, scoped, tag = 'scoped memory for tpu_custom_call.1']
    #allocation6 [shape = 'u8[16384]{0}', space=vmem, size = 0x4000, scoped, tag = 'input window, operand 1']
    #allocation7 [shape = 's32[2]{0}', space=sflag, size = 0x8, scoped, tag = 'scoped memory for tpu_custom_call.1']
    #allocation8 [shape = 'u8[16384]{0}', space=vmem, size = 0x4000, scoped, tag = 'input window, operand 2']
    #allocation9 [shape = 'u8[65536]{0}', space=vmem, size = 0x10000, scoped, tag = 'input window, operand 3']
    #allocation10 [shape = 's32[2]{0}', space=sflag, size = 0x8, scoped, tag = 'scoped memory for tpu_custom_call.1']
    #allocation11 [shape = 'u8[131072]{0}', space=vmem, size = 0x20000, scoped, tag = 'input window, operand 5']
    #allocation12 [shape = 'u8[32768]{0}', space=vmem, size = 0x8000, scoped, tag = 'output window, operand 0']
    %12 = vsyncpa [#allocation4], 0
    %s13 = scalar_lea.sflag [#allocation4], 1
    %14 = vsyncpa %s13, 0
    %15 = vsyncpa [#allocation7], 0
    %s16 = scalar_lea.sflag [#allocation7], 1
    %17 = vsyncpa %s16, 0
    %18 = vsyncpa [#allocation10], 0
    %s19 = scalar_lea.sflag [#allocation10], 1
    %20 = vsyncpa %s19, 0
    %21 = vsyncpa [#allocation5], 0
    %s22 = scalar_lea.sflag [#allocation5], 1
    %23 = vsyncpa %s22, 0
    loop: start=0, step=1, limit=5
    $region2: #{tpu_custom_call.1} parent=1 // loop_pre_header
      _
    $region3: #{tpu_custom_call.1} parent=1 // loop_header
      %s25 = sphi 0, %s29
      %p26 = scmp.ge.s32.totalorder %s25, 5
      %s32 = sphi 0, %s51
      %s33 = sphi 0, %s47
      %s34 = sphi 0, %s43
      %s35 = sphi 0, %s32
      %s36 = sphi 0, %s33
      %s37 = sphi 0, %s34
      %s38 = sphi 0, %s35
      %s39 = sphi 0, %s36
      %s40 = sphi 0, %s37
      %s62 = sphi 0, %s64
      %s65 = sphi 0, %s62
      %s66 = sphi 0, %s65
      %s82 = sphi 0, %s66
      %s96 = sphi 0, %s98
      %s99 = sphi 0, %s96
      %s100 = sphi 0, %s99
      %s116 = sphi 0, %s100
      %s130 = sphi 0, %s132
      %s133 = sphi 0, %s130
      %s134 = sphi 0, %s133
      %s150 = sphi 0, %s134
      %s158 = sphi 0, %s160
      %s161 = sphi 0, %s158
      %s162 = sphi 0, %s161
      %s178 = sphi 0, %s162
      %s184 = sphi 0, %s186
      %s187 = sphi 0, %s184
      %s188 = sphi 0, %s187
      %s204 = sphi 0, %s188
      %s210 = sphi 0, %s212
      %s213 = sphi 0, %s210
      %s214 = sphi 0, %s213
      %s230 = sphi 0, %s214
      %s236 = sphi 0, %s238
      %s239 = sphi 0, %s236
      %s240 = sphi 0, %s239
      %s256 = sphi 0, %s240
      %s264 = sphi 0, %s266
      %s267 = sphi 0, %s264
      %s268 = sphi 0, %s267
      %s284 = sphi 0, %s268
    $region4: #{tpu_custom_call.1} parent=1 // loop_header_branch
      %28 = sbr.rel (%p26) target = $region8
    $region5: #{tpu_custom_call.1} parent=1 // loop_body
      %s30 = ssub.s32 %s25, 1
      %s31 = ssub.s32 %s25, 2
      %s41 = sadd.s32 1, %s34
      %p42 = scmp.ge.s32.totalorder %s41, 1
      %s43 = scalar_select %p42, 0, %s41
      %s44 = sadd.s32 1, %s33
      %s45 = scalar_select %p42, %s44, %s33
      %p46 = scmp.ge.s32.totalorder %s45, 1
      %s47 = scalar_select %p46, 0, %s45
      %s48 = sadd.s32 1, %s32
      %s49 = scalar_select %p46, %s48, %s32
      %p50 = scmp.ge.s32.totalorder %s49, 3
      %s51 = scalar_select %p50, 0, %s49
      %p52 = scmp.eq.s32.totalorder %s32, 0
      %s53 = scalar_select %p52, %s33, 0
      %s54 = scalar_select %p52, %s34, 0
      %p55 = scmp.eq.s32.totalorder %s51, 0
      %s56 = scalar_select %p55, %s47, 0
      %s57 = scalar_select %p55, %s43, 0
      %s58 = ssub.s32 %s53, %s56
      %s59 = ssub.s32 %s54, %s57
      %s60 = sor.u32 %s58, %s59
      %p61 = scmp.eq.s32.totalorder %s60, 0
      %s63 = sadd.s32 %s62, 1
      %s64 = scalar_select %p61, %s62, %s63
      %p67 = pneg %p61
      %p68 = scmp.eq.s32.totalorder %s25, 2
      %p69 = por %p67, %p68
      %p70 = scmp.ne.s32.totalorder %s62, %s65
      %p71 = scmp.eq.s32.totalorder %s25, 0
      %p72 = por %p70, %p71
      %p73 = scmp.ne.s32.totalorder %s62, %s65
      %p74 = scmp.eq.s32.totalorder %s30, 2
      %p75 = por %p73, %p74
      %p76 = scmp.ne.s32.totalorder %s65, %s66
      %p77 = scmp.eq.s32.totalorder %s30, 0
      %p78 = por %p76, %p77
      %p79 = scmp.ne.s32.totalorder %s65, %s66
      %p80 = scmp.eq.s32.totalorder %s31, 2
      %p81 = por %p79, %p80
      %p83 = scmp.ne.s32.totalorder %s66, %s82
      %p84 = scmp.eq.s32.totalorder %s31, 0
      %p85 = por %p83, %p84
      %p86 = scmp.eq.s32.totalorder %s32, 1
      %s87 = scalar_select %p86, %s33, 0
      %s88 = scalar_select %p86, %s34, 0
      %p89 = scmp.eq.s32.totalorder %s51, 1
      %s90 = scalar_select %p89, %s47, 0
      %s91 = scalar_select %p89, %s43, 0
      %s92 = ssub.s32 %s87, %s90
      %s93 = ssub.s32 %s88, %s91
      %s94 = sor.u32 %s92, %s93
      %p95 = scmp.eq.s32.totalorder %s94, 0
      %s97 = sadd.s32 %s96, 1
      %s98 = scalar_select %p95, %s96, %s97
      %p101 = pneg %p95
      %p102 = scmp.eq.s32.totalorder %s25, 2
      %p103 = por %p101, %p102
      %p104 = scmp.ne.s32.totalorder %s96, %s99
      %p105 = scmp.eq.s32.totalorder %s25, 0
      %p106 = por %p104, %p105
      %p107 = scmp.ne.s32.totalorder %s96, %s99
      %p108 = scmp.eq.s32.totalorder %s30, 2
      %p109 = por %p107, %p108
      %p110 = scmp.ne.s32.totalorder %s99, %s100
      %p111 = scmp.eq.s32.totalorder %s30, 0
      %p112 = por %p110, %p111
      %p113 = scmp.ne.s32.totalorder %s99, %s100
      %p114 = scmp.eq.s32.totalorder %s31, 2
      %p115 = por %p113, %p114
      %p117 = scmp.ne.s32.totalorder %s100, %s116
      %p118 = scmp.eq.s32.totalorder %s31, 0
      %p119 = por %p117, %p118
      %p120 = scmp.eq.s32.totalorder %s32, 2
      %s121 = scalar_select %p120, %s33, 0
      %s122 = scalar_select %p120, %s34, 0
      %p123 = scmp.eq.s32.totalorder %s51, 2
      %s124 = scalar_select %p123, %s47, 0
      %s125 = scalar_select %p123, %s43, 0
      %s126 = ssub.s32 %s121, %s124
      %s127 = ssub.s32 %s122, %s125
      %s128 = sor.u32 %s126, %s127
      %p129 = scmp.eq.s32.totalorder %s128, 0
      %s131 = sadd.s32 %s130, 1
      %s132 = scalar_select %p129, %s130, %s131
      %p135 = pneg %p129
      %p136 = scmp.eq.s32.totalorder %s25, 2
      %p137 = por %p135, %p136
      %p138 = scmp.ne.s32.totalorder %s130, %s133
      %p139 = scmp.eq.s32.totalorder %s25, 0
      %p140 = por %p138, %p139
      %p141 = scmp.ne.s32.totalorder %s130, %s133
      %p142 = scmp.eq.s32.totalorder %s30, 2
      %p143 = por %p141, %p142
      %p144 = scmp.ne.s32.totalorder %s133, %s134
      %p145 = scmp.eq.s32.totalorder %s30, 0
      %p146 = por %p144, %p145
      %p147 = scmp.ne.s32.totalorder %s133, %s134
      %p148 = scmp.eq.s32.totalorder %s31, 2
      %p149 = por %p147, %p148
      %p151 = scmp.ne.s32.totalorder %s134, %s150
      %p152 = scmp.eq.s32.totalorder %s31, 0
      %p153 = por %p151, %p152
      %s154 = ssub.s32 %s32, %s51
      %s155 = ssub.s32 %s34, %s43
      %s156 = sor.u32 %s154, %s155
      %p157 = scmp.eq.s32.totalorder %s156, 0
      %s159 = sadd.s32 %s158, 1
      %s160 = scalar_select %p157, %s158, %s159
      %p163 = pneg %p157
      %p164 = scmp.eq.s32.totalorder %s25, 2
      %p165 = por %p163, %p164
      %p166 = scmp.ne.s32.totalorder %s158, %s161
      %p167 = scmp.eq.s32.totalorder %s25, 0
      %p168 = por %p166, %p167
      %p169 = scmp.ne.s32.totalorder %s158, %s161
      %p170 = scmp.eq.s32.totalorder %s30, 2
      %p171 = por %p169, %p170
      %p172 = scmp.ne.s32.totalorder %s161, %s162
      %p173 = scmp.eq.s32.totalorder %s30, 0
      %p174 = por %p172, %p173
      %p175 = scmp.ne.s32.totalorder %s161, %s162
      %p176 = scmp.eq.s32.totalorder %s31, 2
      %p177 = por %p175, %p176
      %p179 = scmp.ne.s32.totalorder %s162, %s178
      %p180 = scmp.eq.s32.totalorder %s31, 0
      %p181 = por %p179, %p180
      %s182 = ssub.s32 %s32, %s51
      %p183 = scmp.eq.s32.totalorder %s182, 0
      %s185 = sadd.s32 %s184, 1
      %s186 = scalar_select %p183, %s184, %s185
      %p189 = pneg %p183
      %p190 = scmp.eq.s32.totalorder %s25, 2
      %p191 = por %p189, %p190
      %p192 = scmp.ne.s32.totalorder %s184, %s187
      %p193 = scmp.eq.s32.totalorder %s25, 0
      %p194 = por %p192, %p193
      %p195 = scmp.ne.s32.totalorder %s184, %s187
      %p196 = scmp.eq.s32.totalorder %s30, 2
      %p197 = por %p195, %p196
      %p198 = scmp.ne.s32.totalorder %s187, %s188
      %p199 = scmp.eq.s32.totalorder %s30, 0
      %p200 = por %p198, %p199
      %p201 = scmp.ne.s32.totalorder %s187, %s188
      %p202 = scmp.eq.s32.totalorder %s31, 2
      %p203 = por %p201, %p202
      %p205 = scmp.ne.s32.totalorder %s188, %s204
      %p206 = scmp.eq.s32.totalorder %s31, 0
      %p207 = por %p205, %p206
      %s208 = ssub.s32 %s32, %s51
      %p209 = scmp.eq.s32.totalorder %s208, 0
      %s211 = sadd.s32 %s210, 1
      %s212 = scalar_select %p209, %s210, %s211
      %p215 = pneg %p209
      %p216 = scmp.eq.s32.totalorder %s25, 2
      %p217 = por %p215, %p216
      %p218 = scmp.ne.s32.totalorder %s210, %s213
      %p219 = scmp.eq.s32.totalorder %s25, 0
      %p220 = por %p218, %p219
      %p221 = scmp.ne.s32.totalorder %s210, %s213
      %p222 = scmp.eq.s32.totalorder %s30, 2
      %p223 = por %p221, %p222
      %p224 = scmp.ne.s32.totalorder %s213, %s214
      %p225 = scmp.eq.s32.totalorder %s30, 0
      %p226 = por %p224, %p225
      %p227 = scmp.ne.s32.totalorder %s213, %s214
      %p228 = scmp.eq.s32.totalorder %s31, 2
      %p229 = por %p227, %p228
      %p231 = scmp.ne.s32.totalorder %s214, %s230
      %p232 = scmp.eq.s32.totalorder %s31, 0
      %p233 = por %p231, %p232
      %s234 = ssub.s32 %s32, %s51
      %p235 = scmp.eq.s32.totalorder %s234, 0
      %s237 = sadd.s32 %s236, 1
      %s238 = scalar_select %p235, %s236, %s237
      %p241 = pneg %p235
      %p242 = scmp.eq.s32.totalorder %s25, 2
      %p243 = por %p241, %p242
      %p244 = scmp.ne.s32.totalorder %s236, %s239
      %p245 = scmp.eq.s32.totalorder %s25, 0
      %p246 = por %p244, %p245
      %p247 = scmp.ne.s32.totalorder %s236, %s239
      %p248 = scmp.eq.s32.totalorder %s30, 2
      %p249 = por %p247, %p248
      %p250 = scmp.ne.s32.totalorder %s239, %s240
      %p251 = scmp.eq.s32.totalorder %s30, 0
      %p252 = por %p250, %p251
      %p253 = scmp.ne.s32.totalorder %s239, %s240
      %p254 = scmp.eq.s32.totalorder %s31, 2
      %p255 = por %p253, %p254
      %p257 = scmp.ne.s32.totalorder %s240, %s256
      %p258 = scmp.eq.s32.totalorder %s31, 0
      %p259 = por %p257, %p258
      %s260 = ssub.s32 %s32, %s51
      %s261 = ssub.s32 %s33, %s47
      %s262 = sor.u32 %s260, %s261
      %p263 = scmp.eq.s32.totalorder %s262, 0
      %s265 = sadd.s32 %s264, 1
      %s266 = scalar_select %p263, %s264, %s265
      %p269 = pneg %p263
      %p270 = scmp.eq.s32.totalorder %s25, 2
      %p271 = por %p269, %p270
      %p272 = scmp.ne.s32.totalorder %s264, %s267
      %p273 = scmp.eq.s32.totalorder %s25, 0
      %p274 = por %p272, %p273
      %p275 = scmp.ne.s32.totalorder %s264, %s267
      %p276 = scmp.eq.s32.totalorder %s30, 2
      %p277 = por %p275, %p276
      %p278 = scmp.ne.s32.totalorder %s267, %s268
      %p279 = scmp.eq.s32.totalorder %s30, 0
      %p280 = por %p278, %p279
      %p281 = scmp.ne.s32.totalorder %s267, %s268
      %p282 = scmp.eq.s32.totalorder %s31, 2
      %p283 = por %p281, %p282
      %p285 = scmp.ne.s32.totalorder %s268, %s284
      %p286 = scmp.eq.s32.totalorder %s31, 0
      %p287 = por %p285, %p286
      %p288 = scmp.le.s32.totalorder 1, %s25
      %p289 = scmp.lt.s32.totalorder %s25, 4
      %p290 = pnand %p288, %p289
      %p291 = pneg %p290
      // Predicated region
      $region9: #{tpu_custom_call.1} parent=5 // pred_check
        _
      $region10: #{tpu_custom_call.1} parent=5 // pred_check_branch
        %293 = sbr.rel (%p290) target = $region12
      $region11: #{tpu_custom_call.1} parent=5 // pred_region
        %s294 = ssub.s32 %s25, 1
      $region12: #{tpu_custom_call.1} parent=5 // pred_fallthru
        _
      %p295 = scmp.lt.s32.totalorder %s25, 3
      // Predicated region
      $region13: #{tpu_custom_call.1} parent=5 // pred_check
        %p296 = pneg %p295
      $region14: #{tpu_custom_call.1} parent=5 // pred_check_branch
        %298 = sbr.rel (%p296) target = $region16
      $region15: #{tpu_custom_call.1} parent=5 // pred_region
        // Predicated region
        $region17: #{tpu_custom_call.1} parent=15 // pred_check
          %p299 = pneg %p72
        $region18: #{tpu_custom_call.1} parent=15 // pred_check_branch
          %301 = sbr.rel (%p299) target = $region20
        $region19: #{tpu_custom_call.1} parent=15 // pred_region
          %s302 = sand.u32 %s62, 1
          %s303 = scalar_lea.sflag [#allocation4], %s302
          %s304 = sand.u32 %s62, 1
          %s305 = smul.addr %s304, 16
          %s306 = scalar_lea.vmem [#allocation3], %s305
          %p307 = scmp.eq.s32.totalorder %s32, 0
          %s308 = scalar_select %p307, %s33, 0
          %s309 = scalar_select %p307, %s34, 0
          %s310 = smul.u32 2, %s308
          %s312 = ssub.s32 256, 256
          %313 = vsyncadd %s303, %s312
          %s314 = sadd.s32 %s309, %s310
          %s315 = smul.addr %s314, 128
          %s316 = scalar_lea.hbm %s0, %s315
          %s317 = sshll.u32 %s306, 4
          %s318 = int_to_ptr.vmem [resolvable:$true] %s317
          %323 = dma.hbm_to_vmem [thread:$0]  %s316, 256, %s318, %s303, 128, 128, 8
        $region20: #{tpu_custom_call.1} parent=15 // pred_fallthru
          _
        // Predicated region
        $region21: #{tpu_custom_call.1} parent=15 // pred_check
          %p324 = pneg %p106
        $region22: #{tpu_custom_call.1} parent=15 // pred_check_branch
          %326 = sbr.rel (%p324) target = $region24
        $region23: #{tpu_custom_call.1} parent=15 // pred_region
          %s327 = sand.u32 %s25, 1
          %s328 = scalar_lea.sflag [#allocation7], %s327
          %s329 = sand.u32 %s96, 1
          %s330 = smul.addr %s329, 16
          %s331 = scalar_lea.vmem [#allocation6], %s330
          %p332 = scmp.eq.s32.totalorder %s32, 1
          %s333 = scalar_select %p332, %s33, 0
          %s334 = scalar_select %p332, %s34, 0
          %s335 = smul.u32 2, %s333
          %s337 = ssub.s32 256, 256
          %338 = vsyncadd %s328, %s337
          %s339 = sadd.s32 %s334, %s335
          %s340 = smul.addr %s339, 128
          %s341 = scalar_lea.hbm %s1, %s340
          %s342 = sshll.u32 %s331, 4
          %s343 = int_to_ptr.vmem [resolvable:$true] %s342
          %348 = dma.hbm_to_vmem [thread:$0]  %s341, 256, %s343, %s328, 128, 128, 8
        $region24: #{tpu_custom_call.1} parent=15 // pred_fallthru
          _
        // Predicated region
        $region25: #{tpu_custom_call.1} parent=15 // pred_check
          %p349 = pneg %p140
        $region26: #{tpu_custom_call.1} parent=15 // pred_check_branch
          %351 = sbr.rel (%p349) target = $region28
        $region27: #{tpu_custom_call.1} parent=15 // pred_region
          %s352 = sand.u32 %s25, 1
          %s353 = scalar_lea.sflag [#allocation7], %s352
          %s354 = sand.u32 %s130, 1
          %s355 = smul.addr %s354, 16
          %s356 = scalar_lea.vmem [#allocation8], %s355
          %p357 = scmp.eq.s32.totalorder %s32, 2
          %s358 = scalar_select %p357, %s33, 0
          %s359 = scalar_select %p357, %s34, 0
          %s360 = smul.u32 2, %s358
          %s362 = ssub.s32 256, 256
          %363 = vsyncadd %s353, %s362
          %s364 = sadd.s32 %s359, %s360
          %s365 = smul.addr %s364, 128
          %s366 = scalar_lea.hbm %s2, %s365
          %s367 = sshll.u32 %s356, 4
          %s368 = int_to_ptr.vmem [resolvable:$true] %s367
          %373 = dma.hbm_to_vmem [thread:$0]  %s366, 256, %s368, %s353, 128, 128, 8
        $region28: #{tpu_custom_call.1} parent=15 // pred_fallthru
          _
        // Predicated region
        $region29: #{tpu_custom_call.1} parent=15 // pred_check
          %p374 = pneg %p168
        $region30: #{tpu_custom_call.1} parent=15 // pred_check_branch
          %376 = sbr.rel (%p374) target = $region32
        $region31: #{tpu_custom_call.1} parent=15 // pred_region
          %s377 = sand.u32 %s25, 1
          %s378 = scalar_lea.sflag [#allocation10], %s377
          %s379 = sand.u32 %s158, 1
          %s380 = smul.addr %s379, 64
          %s381 = scalar_lea.vmem [#allocation9], %s380
          %s382 = smul.u32 16, %s34
          %s384 = ssub.s32 1024, 1024
          %385 = vsyncadd %s378, %s384
          %s386 = smul.addr %s32, 16
          %s387 = sadd.s32 %s382, %s386
          %s388 = smul.addr %s387, 64
          %s389 = scalar_lea.hbm %s3, %s388
          %s390 = sshll.u32 %s381, 4
          %s391 = int_to_ptr.vmem [resolvable:$true] %s390
          %396 = dma.hbm_to_vmem [thread:$0]  %s389, 1024, %s391, %s378, 64, 64, 4
        $region32: #{tpu_custom_call.1} parent=15 // pred_fallthru
          _
        // Predicated region
        $region33: #{tpu_custom_call.1} parent=15 // pred_check
          %p397 = pneg %p194
        $region34: #{tpu_custom_call.1} parent=15 // pred_check_branch
          %399 = sbr.rel (%p397) target = $region36
        $region35: #{tpu_custom_call.1} parent=15 // pred_region
          %p400 = scmp.lt.s32.totalorder %s32, 2
          %s401 = scalar_select %p400, %s32, 2
          %s402 = scalar_lea.vmem %s4, %s401
        $region36: #{tpu_custom_call.1} parent=15 // pred_fallthru
          _
        // Predicated region
        $region37: #{tpu_custom_call.1} parent=15 // pred_check
          %p403 = pneg %p220
        $region38: #{tpu_custom_call.1} parent=15 // pred_check_branch
          %405 = sbr.rel (%p403) target = $region40
        $region39: #{tpu_custom_call.1} parent=15 // pred_region
          %s406 = sand.u32 %s25, 1
          %s407 = scalar_lea.sflag [#allocation10], %s406
          %s408 = sand.u32 %s210, 1
          %s409 = smul.addr %s408, 128
          %s410 = scalar_lea.vmem [#allocation11], %s409
          %s412 = ssub.s32 2048, 2048
          %413 = vsyncadd %s407, %s412
          %s414 = smul.addr %s32, 32
          %s415 = smul.addr %s414, 64
          %s416 = scalar_lea.hbm %s5, %s415
          %s417 = sshll.u32 %s410, 4
          %s418 = int_to_ptr.vmem [resolvable:$true] %s417
          %423 = dma.hbm_to_vmem [thread:$0]  %s416, 2048, %s418, %s407, 128, 128, 8
        $region40: #{tpu_custom_call.1} parent=15 // pred_fallthru
          _
        // Predicated region
        $region41: #{tpu_custom_call.1} parent=15 // pred_check
          %p424 = pneg %p246
        $region42: #{tpu_custom_call.1} parent=15 // pred_check_branch
          %426 = sbr.rel (%p424) target = $region44
        $region43: #{tpu_custom_call.1} parent=15 // pred_region
          %p427 = scmp.lt.s32.totalorder %s32, 2
          %s428 = scalar_select %p427, %s32, 2
          %s429 = smul.addr %s428, 2
          %s430 = scalar_lea.vmem %s6, %s429
        $region44: #{tpu_custom_call.1} parent=15 // pred_fallthru
          _
      $region16: #{tpu_custom_call.1} parent=5 // pred_fallthru
        _
      %p431 = scmp.le.s32.totalorder 1, %s25
      %p432 = scmp.lt.s32.totalorder %s25, 4
      %p433 = pnand %p431, %p432
      %p434 = pneg %p433
      // Predicated region
      $region45: #{tpu_custom_call.1} parent=5 // pred_check
        _
      $region46: #{tpu_custom_call.1} parent=5 // pred_check_branch
        %436 = sbr.rel (%p433) target = $region48
      $region47: #{tpu_custom_call.1} parent=5 // pred_region
        %s437 = ssub.s32 %s25, 1
        %s438 = sand.u32 %s65, 1
        %s439 = scalar_lea.sflag [#allocation4], %s438
        %s440 = sand.u32 %s65, 1
        %s441 = smul.addr %s440, 16
        %s442 = scalar_lea.vmem [#allocation3], %s441
        // Predicated region
        $region49: #{tpu_custom_call.1} parent=47 // pred_check
          %p443 = pneg %p78
        $region50: #{tpu_custom_call.1} parent=47 // pred_check_branch
          %445 = sbr.rel (%p443) target = $region52
        $region51: #{tpu_custom_call.1} parent=47 // pred_region
          %446 = dma.done %s439, 256
        $region52: #{tpu_custom_call.1} parent=47 // pred_fallthru
          _
        %s447 = sand.u32 %s30, 1
        %s448 = scalar_lea.sflag [#allocation7], %s447
        %s449 = sand.u32 %s99, 1
        %s450 = smul.addr %s449, 16
        %s451 = scalar_lea.vmem [#allocation6], %s450
        // Predicated region
        $region53: #{tpu_custom_call.1} parent=47 // pred_check
          %p452 = pneg %p112
        $region54: #{tpu_custom_call.1} parent=47 // pred_check_branch
          %454 = sbr.rel (%p452) target = $region56
        $region55: #{tpu_custom_call.1} parent=47 // pred_region
          %455 = dma.done %s448, 256
        $region56: #{tpu_custom_call.1} parent=47 // pred_fallthru
          _
        %s456 = sand.u32 %s30, 1
        %s457 = scalar_lea.sflag [#allocation7], %s456
        %s458 = sand.u32 %s133, 1
        %s459 = smul.addr %s458, 16
        %s460 = scalar_lea.vmem [#allocation8], %s459
        // Predicated region
        $region57: #{tpu_custom_call.1} parent=47 // pred_check
          %p461 = pneg %p146
        $region58: #{tpu_custom_call.1} parent=47 // pred_check_branch
          %463 = sbr.rel (%p461) target = $region60
        $region59: #{tpu_custom_call.1} parent=47 // pred_region
          %464 = dma.done %s457, 256
        $region60: #{tpu_custom_call.1} parent=47 // pred_fallthru
          _
        %s465 = sand.u32 %s30, 1
        %s466 = scalar_lea.sflag [#allocation10], %s465
        %s467 = sand.u32 %s161, 1
        %s468 = smul.addr %s467, 64
        %s469 = scalar_lea.vmem [#allocation9], %s468
        // Predicated region
        $region61: #{tpu_custom_call.1} parent=47 // pred_check
          %p470 = pneg %p174
        $region62: #{tpu_custom_call.1} parent=47 // pred_check_branch
          %472 = sbr.rel (%p470) target = $region64
        $region63: #{tpu_custom_call.1} parent=47 // pred_region
          %473 = dma.done %s466, 1024
        $region64: #{tpu_custom_call.1} parent=47 // pred_fallthru
          _
        %s474 = sand.u32 %s30, 1
        %s475 = scalar_lea.sflag [#allocation10], %s474
        %s476 = sand.u32 %s213, 1
        %s477 = smul.addr %s476, 128
        %s478 = scalar_lea.vmem [#allocation11], %s477
        // Predicated region
        $region65: #{tpu_custom_call.1} parent=47 // pred_check
          %p479 = pneg %p226
        $region66: #{tpu_custom_call.1} parent=47 // pred_check_branch
          %481 = sbr.rel (%p479) target = $region68
        $region67: #{tpu_custom_call.1} parent=47 // pred_region
          %482 = dma.done %s475, 2048
        $region68: #{tpu_custom_call.1} parent=47 // pred_fallthru
          _
        %s483 = sand.u32 %s65, 1
        %s484 = scalar_lea.sflag [#allocation4], %s483
        %s485 = sand.u32 %s65, 1
        %s486 = smul.addr %s485, 16
        %s487 = scalar_lea.vmem [#allocation3], %s486
        %p488 = pneg %p78
        %p489 = pneg %p75
        %s490 = sand.u32 %s30, 1
        %s491 = scalar_lea.sflag [#allocation7], %s490
        %s492 = sand.u32 %s99, 1
        %s493 = smul.addr %s492, 16
        %s494 = scalar_lea.vmem [#allocation6], %s493
        %p495 = pneg %p112
        %p496 = pneg %p109
        %s497 = sand.u32 %s30, 1
        %s498 = scalar_lea.sflag [#allocation7], %s497
        %s499 = sand.u32 %s133, 1
        %s500 = smul.addr %s499, 16
        %s501 = scalar_lea.vmem [#allocation8], %s500
        %p502 = pneg %p146
        %p503 = pneg %p143
        %s504 = sand.u32 %s30, 1
        %s505 = scalar_lea.sflag [#allocation10], %s504
        %s506 = sand.u32 %s161, 1
        %s507 = smul.addr %s506, 64
        %s508 = scalar_lea.vmem [#allocation9], %s507
        %p509 = pneg %p174
        %p510 = pneg %p171
        %p511 = scmp.lt.s32.totalorder %s35, 2
        %s512 = scalar_select %p511, %s35, 2
        %s513 = scalar_lea.vmem %s4, %s512
        %p514 = pneg %p200
        %p515 = pneg %p197
        %s516 = sand.u32 %s30, 1
        %s517 = scalar_lea.sflag [#allocation10], %s516
        %s518 = sand.u32 %s213, 1
        %s519 = smul.addr %s518, 128
        %s520 = scalar_lea.vmem [#allocation11], %s519
        %p521 = pneg %p226
        %p522 = pneg %p223
        %p523 = scmp.lt.s32.totalorder %s35, 2
        %s524 = scalar_select %p523, %s35, 2
        %s525 = smul.addr %s524, 2
        %s526 = scalar_lea.vmem %s6, %s525
        %p527 = pneg %p252
        %p528 = pneg %p249
        %p529 = pneg %p280
        %p530 = pneg %p277
        %s531 = sand.u32 %s267, 1
        %s532 = scalar_lea.sflag [#allocation5], %s531
        %s533 = sand.u32 %s267, 1
        %s534 = smul.addr %s533, 32
        %s535 = scalar_lea.vmem [#allocation12], %s534
        %p536 = scmp.eq.s32.totalorder %s35, 0
        %s537 = scalar_select %p536, %s36, 0
        %s538 = scalar_select %p536, %s37, 0
        %s539 = smul.u32 2, %s537
        %p540 = scmp.eq.s32.totalorder %s35, 1
        %s541 = scalar_select %p540, %s36, 0
        %s542 = scalar_select %p540, %s37, 0
        %s543 = smul.u32 2, %s541
        %p544 = scmp.eq.s32.totalorder %s35, 2
        %s545 = scalar_select %p544, %s36, 0
        %s546 = scalar_select %p544, %s37, 0
        %s547 = smul.u32 2, %s545
        %s548 = smul.u32 16, %s37
        %p549 = scmp.lt.s32.totalorder %s35, 2
        %s550 = scalar_select %p549, %s35, 2
        %s551 = scalar_lea.vmem %s4, %s550
        %p552 = scmp.lt.s32.totalorder %s35, 2
        %s553 = scalar_select %p552, %s35, 2
        %s554 = smul.addr %s553, 2
        %s555 = scalar_lea.vmem %s6, %s554
        %s556 = smul.u32 2, %s36
        %p558 = scmp.eq.s32.totalorder %s37, 0
        // Predicated region
        $region69: #{tpu_custom_call.1} parent=47 // pred_check
          %p559 = pneg %p558
        $region70: #{tpu_custom_call.1} parent=47 // pred_check_branch
          %561 = sbr.rel (%p559) target = $region72
        $region71: #{tpu_custom_call.1} parent=47 // pred_region
          %v562 = vld [vmem:[%s551] sm:$0x1]
          %v564 = vlaneseq
          %v565 = vshrl.u32 %v564, 7
          %v566 = vsub.s32 0, %v565
          %v567 = vrot.slane %v562, %v566
          %569 = vst [vmem:[#allocation2] sm:$0xff] %v567
          %570 = vst [vmem:[#allocation2 + $0x8] sm:$0xff] %v567
        $region72: #{tpu_custom_call.1} parent=47 // pred_fallthru
          _
        %p571 = scmp.eq.s32.totalorder %s35, 0
        %v572 = vld [vmem:[%s442] sm:$0xff]
        %v573 = vld [vmem:[%s442 + $0x8] sm:$0xff]
        %p574 = scmp.eq.s32.totalorder %s35, 1
        %v575 = vld [vmem:[%s451] sm:$0xff]
        %v576 = vld [vmem:[%s451 + $0x8] sm:$0xff]
        %v577 = vld [vmem:[%s460] sm:$0xff]
        %v578 = vld [vmem:[%s460 + $0x8] sm:$0xff]
        %s579 = scalar_select %p574, 1, 0
        %v580 = vstv %s579
        %vm581 = vcmp.eq.s32.totalorder %v580, 1
        %v582 = vsel %vm581, %v575, %v577
        %v583 = vsel %vm581, %v576, %v578
        %s584 = scalar_select %p571, 1, 0
        %v585 = vstv %s584
        %vm586 = vcmp.eq.s32.totalorder %v585, 1
        %v587 = vsel %vm586, %v572, %v582
        %v588 = vsel %vm586, %v573, %v583
        %v589 = vld [vmem:[#allocation2] sm:$0xff]
        %v590 = vld [vmem:[#allocation2 + $0x8] sm:$0xff]
        %v591 = vpack.c.bf16 %v588, %v587
        %v592 = vld [vmem:[%s469] sm:$0xf]
        %v593 = vld [vmem:[%s469 + $0x4] sm:$0xf]
        %v594 = vld [vmem:[%s469 + $0x8] sm:$0xf]
        %v595 = vld [vmem:[%s469 + $0xc] sm:$0xf]
        %v596 = vld [vmem:[%s469 + $0x10] sm:$0xf]
        %v597 = vld [vmem:[%s469 + $0x14] sm:$0xf]
        %v598 = vld [vmem:[%s469 + $0x18] sm:$0xf]
        %v599 = vld [vmem:[%s469 + $0x1c] sm:$0xf]
        %v600 = vld [vmem:[%s469 + $0x20] sm:$0xf]
        %v601 = vld [vmem:[%s469 + $0x24] sm:$0xf]
        %v602 = vld [vmem:[%s469 + $0x28] sm:$0xf]
        %v603 = vld [vmem:[%s469 + $0x2c] sm:$0xf]
        %v604 = vld [vmem:[%s469 + $0x30] sm:$0xf]
        %v605 = vld [vmem:[%s469 + $0x34] sm:$0xf]
        %v606 = vld [vmem:[%s469 + $0x38] sm:$0xf]
        %v607 = vld [vmem:[%s469 + $0x3c] sm:$0xf]
        %v624 = vunpack.c.l.b16 %v592
        %v625 = vunpack.c.l.b16 %v593
        %v626 = vunpack.c.l.b16 %v594
        %v627 = vunpack.c.l.b16 %v595
        %v628 = vunpack.c.l.b16 %v596
        %v629 = vunpack.c.l.b16 %v597
        %v630 = vunpack.c.l.b16 %v598
        %v631 = vunpack.c.l.b16 %v599
        %v632 = vunpack.c.l.b16 %v600
        %v633 = vunpack.c.l.b16 %v601
        %v634 = vunpack.c.l.b16 %v602
        %v635 = vunpack.c.l.b16 %v603
        %v636 = vunpack.c.l.b16 %v604
        %v637 = vunpack.c.l.b16 %v605
        %v638 = vunpack.c.l.b16 %v606
        %v639 = vunpack.c.l.b16 %v607
        %v640 = vpack.c.b16 %v625, %v624
        %v641 = vpack.c.b16 %v627, %v626
        %v642 = vpack.c.b16 %v629, %v628
        %v643 = vpack.c.b16 %v631, %v630
        %v644 = vpack.c.b16 %v633, %v632
        %v645 = vpack.c.b16 %v635, %v634
        %v646 = vpack.c.b16 %v637, %v636
        %v647 = vpack.c.b16 %v639, %v638
        %656 = vmatprep.subr.bf16.mxu0 0
        %657 = vmatpush1.bf16.msra.mxu0 %v640
        %658 = vmatprep.subr.bf16.mxu0 0
        %659 = vmatpush1.bf16.msra.mxu0 %v641
        %660 = vmatprep.subr.bf16.mxu0 0
        %661 = vmatpush1.bf16.msra.mxu0 %v642
        %662 = vmatprep.subr.bf16.mxu0 0
        %663 = vmatpush1.bf16.msra.mxu0 %v643
        %664 = vmatprep.subr.bf16.mxu0 0
        %665 = vmatpush1.bf16.msra.mxu0 %v644
        %666 = vmatprep.subr.bf16.mxu0 0
        %667 = vmatpush1.bf16.msra.mxu0 %v645
        %668 = vmatprep.subr.bf16.mxu0 0
        %669 = vmatpush1.bf16.msra.mxu0 %v646
        %670 = vmatprep.subr.bf16.mxu0 0
        %671 = vmatpush1.bf16.msra.mxu0 %v647
        %672 = vmatprep.subr.bf16.mxu0 0
        %673 = vmatpush1.bf16.msra.mxu0 0
        %674 = vmatprep.subr.bf16.mxu0 0
        %675 = vmatpush1.bf16.msra.mxu0 0
        %676 = vmatprep.subr.bf16.mxu0 0
        %677 = vmatpush1.bf16.msra.mxu0 0
        %678 = vmatprep.subr.bf16.mxu0 0
        %679 = vmatpush1.bf16.msra.mxu0 0
        %680 = vmatprep.subr.bf16.mxu0 0
        %681 = vmatpush1.bf16.msra.mxu0 0
        %682 = vmatprep.subr.bf16.mxu0 0
        %683 = vmatpush1.bf16.msra.mxu0 0
        %684 = vmatprep.subr.bf16.mxu0 0
        %685 = vmatpush1.bf16.msra.mxu0 0
        %686 = vmatprep.subr.bf16.mxu0 0
        %687 = vmatpush1.bf16.msra.mxu0 0
        %688 = vmatprep.mubr.bf16.mxu0 0
        %689 = vmatmul.mubr.bf16.gmra.mrb[0].mxu0 %v591
        %v690 = vpop.f32.mrb[0].mxu0
        %v691 = vadd.f32 0.0, %v690
        %v692 = vpop.f32.mrb[0].mxu0
        %v693 = vpop.f32.mrb[0].mxu0
        %v694 = vadd.f32 0.0, %v693
        %v695 = vpop.f32.mrb[0].mxu0
        %696 = vdwg.mxu0
        %v697 = vadd.f32 %v589, %v691
        %v698 = vadd.f32 %v590, %v694
        %699 = vst [vmem:[#allocation2] sm:$0xff] %v697
        %700 = vst [vmem:[#allocation2 + $0x8] sm:$0xff] %v698
        // Predicated region
        $region73: #{tpu_custom_call.1} parent=47 // pred_check
          %p701 = pneg %p558
        $region74: #{tpu_custom_call.1} parent=47 // pred_check_branch
          %703 = sbr.rel (%p701) target = $region76
        $region75: #{tpu_custom_call.1} parent=47 // pred_region
          %v704 = vld [vmem:[#allocation2] sm:$0xff]
          %v705 = vld [vmem:[#allocation2 + $0x8] sm:$0xff]
          %v706 = vmax.f32 %v704, 0.0
          %v707 = vmax.f32 %v705, 0.0
          %v708 = vpack.c.bf16 %v707, %v706
          %v709 = vld [vmem:[%s478] sm:$0xff]
          %v710 = vld [vmem:[%s478 + $0x8] sm:$0xff]
          %v711 = vld [vmem:[%s478 + $0x10] sm:$0xff]
          %v712 = vld [vmem:[%s478 + $0x18] sm:$0xff]
          %v713 = vld [vmem:[%s478 + $0x20] sm:$0xff]
          %v714 = vld [vmem:[%s478 + $0x28] sm:$0xff]
          %v715 = vld [vmem:[%s478 + $0x30] sm:$0xff]
          %v716 = vld [vmem:[%s478 + $0x38] sm:$0xff]
          %v717 = vld [vmem:[%s478 + $0x40] sm:$0xff]
          %v718 = vld [vmem:[%s478 + $0x48] sm:$0xff]
          %v719 = vld [vmem:[%s478 + $0x50] sm:$0xff]
          %v720 = vld [vmem:[%s478 + $0x58] sm:$0xff]
          %v721 = vld [vmem:[%s478 + $0x60] sm:$0xff]
          %v722 = vld [vmem:[%s478 + $0x68] sm:$0xff]
          %v723 = vld [vmem:[%s478 + $0x70] sm:$0xff]
          %v724 = vld [vmem:[%s478 + $0x78] sm:$0xff]
          %v725 = vld [vmem:[%s555] sm:$0x3]
          %v727 = vlaneseq
          %v728 = vshrl.u32 %v727, 7
          %v729 = vsub.s32 0, %v728
          %v730 = vrot.slane %v725, %v729
          %v731 = vlaneseq
          %v732 = vshrl.u32 %v731, 7
          %v733 = vsub.s32 1, %v732
          %v734 = vrot.slane %v725, %v733
          %v753 = vunpack.c.l.b16 %v709
          %v754 = vunpack.c.h.b16 %v709
          %v755 = vunpack.c.l.b16 %v710
          %v756 = vunpack.c.h.b16 %v710
          %v757 = vunpack.c.l.b16 %v711
          %v758 = vunpack.c.h.b16 %v711
          %v759 = vunpack.c.l.b16 %v712
          %v760 = vunpack.c.h.b16 %v712
          %v761 = vunpack.c.l.b16 %v713
          %v762 = vunpack.c.h.b16 %v713
          %v763 = vunpack.c.l.b16 %v714
          %v764 = vunpack.c.h.b16 %v714
          %v765 = vunpack.c.l.b16 %v715
          %v766 = vunpack.c.h.b16 %v715
          %v767 = vunpack.c.l.b16 %v716
          %v768 = vunpack.c.h.b16 %v716
          %v769 = vunpack.c.l.b16 %v717
          %v770 = vunpack.c.h.b16 %v717
          %v771 = vunpack.c.l.b16 %v718
          %v772 = vunpack.c.h.b16 %v718
          %v773 = vunpack.c.l.b16 %v719
          %v774 = vunpack.c.h.b16 %v719
          %v775 = vunpack.c.l.b16 %v720
          %v776 = vunpack.c.h.b16 %v720
          %v777 = vunpack.c.l.b16 %v721
          %v778 = vunpack.c.h.b16 %v721
          %v779 = vunpack.c.l.b16 %v722
          %v780 = vunpack.c.h.b16 %v722
          %v781 = vunpack.c.l.b16 %v723
          %v782 = vunpack.c.h.b16 %v723
          %v783 = vunpack.c.l.b16 %v724
          %v784 = vunpack.c.h.b16 %v724
          %v785 = vpack.c.b16 %v755, %v753
          %v786 = vpack.c.b16 %v756, %v754
          %v787 = vpack.c.b16 %v759, %v757
          %v788 = vpack.c.b16 %v760, %v758
          %v789 = vpack.c.b16 %v763, %v761
          %v790 = vpack.c.b16 %v764, %v762
          %v791 = vpack.c.b16 %v767, %v765
          %v792 = vpack.c.b16 %v768, %v766
          %v793 = vpack.c.b16 %v771, %v769
          %v794 = vpack.c.b16 %v772, %v770
          %v795 = vpack.c.b16 %v775, %v773
          %v796 = vpack.c.b16 %v776, %v774
          %v797 = vpack.c.b16 %v779, %v777
          %v798 = vpack.c.b16 %v780, %v778
          %v799 = vpack.c.b16 %v783, %v781
          %v800 = vpack.c.b16 %v784, %v782
          %817 = vmatprep.subr.bf16.mxu0 %v786
          %818 = vmatpush1.bf16.msra.mxu0 %v785
          %819 = vmatprep.subr.bf16.mxu0 %v788
          %820 = vmatpush1.bf16.msra.mxu0 %v787
          %821 = vmatprep.subr.bf16.mxu0 %v790
          %822 = vmatpush1.bf16.msra.mxu0 %v789
          %823 = vmatprep.subr.bf16.mxu0 %v792
          %824 = vmatpush1.bf16.msra.mxu0 %v791
          %825 = vmatprep.subr.bf16.mxu0 %v794
          %826 = vmatpush1.bf16.msra.mxu0 %v793
          %827 = vmatprep.subr.bf16.mxu0 %v796
          %828 = vmatpush1.bf16.msra.mxu0 %v795
          %829 = vmatprep.subr.bf16.mxu0 %v798
          %830 = vmatpush1.bf16.msra.mxu0 %v797
          %831 = vmatprep.subr.bf16.mxu0 %v800
          %832 = vmatpush1.bf16.msra.mxu0 %v799
          %833 = vmatprep.subr.bf16.mxu0 0
          %834 = vmatpush1.bf16.msra.mxu0 0
          %835 = vmatprep.subr.bf16.mxu0 0
          %836 = vmatpush1.bf16.msra.mxu0 0
          %837 = vmatprep.subr.bf16.mxu0 0
          %838 = vmatpush1.bf16.msra.mxu0 0
          %839 = vmatprep.subr.bf16.mxu0 0
          %840 = vmatpush1.bf16.msra.mxu0 0
          %841 = vmatprep.subr.bf16.mxu0 0
          %842 = vmatpush1.bf16.msra.mxu0 0
          %843 = vmatprep.subr.bf16.mxu0 0
          %844 = vmatpush1.bf16.msra.mxu0 0
          %845 = vmatprep.subr.bf16.mxu0 0
          %846 = vmatpush1.bf16.msra.mxu0 0
          %847 = vmatprep.subr.bf16.mxu0 0
          %848 = vmatpush1.bf16.msra.mxu0 0
          %849 = vmatprep.mubr.bf16.mxu0 0
          %850 = vmatmul.mubr.bf16.gmra.mrb[0].mxu0 %v708
          %v851 = vpop.f32.mrb[0].mxu0
          %v852 = vadd.f32 %v730, %v851
          %v853 = vpop.f32.mrb[0].mxu0
          %v854 = vadd.f32 %v734, %v853
          %v855 = vpop.f32.mrb[0].mxu0
          %v856 = vadd.f32 %v730, %v855
          %v857 = vpop.f32.mrb[0].mxu0
          %v858 = vadd.f32 %v734, %v857
          %859 = vdwg.mxu0
          %v860 = vmul.f32 %v852, %v852
          %v861 = vmul.f32 %v854, %v854
          %v862 = vmul.f32 %v856, %v856
          %v863 = vmul.f32 %v858, %v858
          %v864 = vadd.f32 %v860, %v861
          %865 = vadd.xlane.f32.xlu0 %v864
          %v866 = vpop.xlane.xlu0 %865
          %v867 = vadd.f32 %v862, %v863
          %868 = vadd.xlane.f32.xlu0 %v867
          %v869 = vpop.xlane.xlu0 %868
          %v870 = vmax.f32 %v866, 1e-24
          %v871 = vmax.f32 %v869, 1e-24
          %v872 = vrsqrt.pop %v870
          %v873 = vrsqrt.pop %v871
          %v874 = vmul.f32 %v852, %v872
          %v875 = vmul.f32 %v854, %v872
          %v876 = vmul.f32 %v856, %v873
          %v877 = vmul.f32 %v858, %v873
          %878 = vst [vmem:[%s535] sm:$0xff] %v874
          %879 = vst [vmem:[%s535 + $0x8] sm:$0xff] %v875
          %880 = vst [vmem:[%s535 + $0x10] sm:$0xff] %v876
          %881 = vst [vmem:[%s535 + $0x18] sm:$0xff] %v877
        $region76: #{tpu_custom_call.1} parent=47 // pred_fallthru
          _
        %s882 = sand.u32 %s267, 1
        %s883 = scalar_lea.sflag [#allocation5], %s882
        %s884 = sand.u32 %s267, 1
        %s885 = smul.addr %s884, 32
        %s886 = scalar_lea.vmem [#allocation12], %s885
        // Predicated region
        $region77: #{tpu_custom_call.1} parent=47 // pred_check
          %p887 = pneg %p277
        $region78: #{tpu_custom_call.1} parent=47 // pred_check_branch
          %889 = sbr.rel (%p887) target = $region80
        $region79: #{tpu_custom_call.1} parent=47 // pred_region
          %s890 = smul.u32 2, %s36
          %s892 = ssub.s32 512, 512
          %893 = vsyncadd %s883, %s892
          %s894 = smul.addr %s890, 2
          %s895 = smul.addr %s35, 4
          %s896 = sadd.s32 %s894, %s895
          %s897 = smul.addr %s896, 128
          %s898 = scalar_lea.hbm %s7, %s897
          %s899 = sshll.u32 %s886, 4
          %s900 = int_to_ptr.vmem [resolvable:$true] %s899
          %905 = dma.vmem_to_hbm [thread:$0]  %s900, 512, %s898, %s883, 256, 256, 16
        $region80: #{tpu_custom_call.1} parent=47 // pred_fallthru
          _
      $region48: #{tpu_custom_call.1} parent=5 // pred_fallthru
        _
      %p906 = scmp.le.s32.totalorder 2, %s25
      // Predicated region
      $region81: #{tpu_custom_call.1} parent=5 // pred_check
        %p907 = pneg %p906
      $region82: #{tpu_custom_call.1} parent=5 // pred_check_branch
        %909 = sbr.rel (%p907) target = $region84
      $region83: #{tpu_custom_call.1} parent=5 // pred_region
        %s910 = ssub.s32 %s25, 2
        // Predicated region
        $region85: #{tpu_custom_call.1} parent=83 // pred_check
          %p911 = pneg %p283
        $region86: #{tpu_custom_call.1} parent=83 // pred_check_branch
          %913 = sbr.rel (%p911) target = $region88
        $region87: #{tpu_custom_call.1} parent=83 // pred_region
          %s914 = sand.u32 %s268, 1
          %s915 = scalar_lea.sflag [#allocation5], %s914
          %s916 = sand.u32 %s268, 1
          %s917 = smul.addr %s916, 32
          %s918 = scalar_lea.vmem [#allocation12], %s917
          %919 = dma.done %s915, 512
        $region88: #{tpu_custom_call.1} parent=83 // pred_fallthru
          _
      $region84: #{tpu_custom_call.1} parent=5 // pred_fallthru
        _
    $region6: #{tpu_custom_call.1} parent=1 // loop_footer
      %s29 = sadd.s32 1, %s25
    $region7: #{tpu_custom_call.1} parent=1 // loop_footer_branch
      %24 = sbr.rel target = $region3
    $region8: #{tpu_custom_call.1} parent=1 // loop_exit
      _
    %920 = vsyncpa [#allocation4], 1
    %s921 = scalar_lea.sflag [#allocation4], 1
    %922 = vsyncpa %s921, 1
    %923 = vsyncpa [#allocation7], 1
    %s924 = scalar_lea.sflag [#allocation7], 1
    %925 = vsyncpa %s924, 1
    %926 = vsyncpa [#allocation10], 1
    %s927 = scalar_lea.sflag [#allocation10], 1
    %928 = vsyncpa %s927, 1
    %929 = vsyncpa [#allocation5], 1
    %s930 = scalar_lea.sflag [#allocation5], 1
    %931 = vsyncpa %s930, 1

</llo_original>
